<compile_context>
chip_gen: v7x
topology: tpu7x:2x2x1
jax: 0.10.0
libtpu: 0.0.40
codegen_flags: <defaults>
</compile_context>

<pallas_src>
import functools

import jax
import jax.numpy as jnp
from jax import lax
from jax.experimental import pallas as pl
from jax.experimental.pallas import tpu as pltpu

LANE = 128      # TPU lane width (last dim)
SUBLANE = 8     # TPU sublane width (second-to-last dim)


def _round_up(x, m):
    return (x + m - 1) // m * m


def _pick_tile_h(H):
    # Prefer >= 2 output-row tiles (pipelining + 2-TC v7x load balance).
    for th in (64, 32, 16, 8):
        if H % th == 0 and H // th >= 2:
            return th
    return H


def _sep_block_kernel(x_ref, wdw_ref, b1_ref, wpw_ref, b2_ref, o_ref, *,
                      TH, THp, W, KH, KW, dil, Cp, Cop, residual):
    """One (batch image, output-row tile) step of the fused SepBlock forward."""
    h = pl.program_id(1)
    row0 = pl.multiple_of(h * TH, TH)          # first padded-input row of this tile

    # The whole padded image for this batch element is resident in VMEM (its
    # block index ignores h); slicing the leading H axis is cheap.
    xt = x_ref[0, pl.ds(row0, THp)]            # (THp, Wp, Cp) f32

    # Build the KW width-shifted views ONCE (one sublane relayout each) and
    # reuse them for every kh tap -> KW relayouts instead of KH*KW.
    xs = [xt[:, kw * dil: kw * dil + W, :] for kw in range(KW)]

    # Depthwise conv. BN1 scale pre-folded into wdw; accumulator starts at the
    # BN1 bias so the only epilogue is the ReLU.
    acc = jnp.broadcast_to(b1_ref[...].reshape(1, 1, Cp), (TH, W, Cp))
    for kw in range(KW):
        for kh in range(KH):
            tap = xs[kw][kh * dil: kh * dil + TH]      # (TH, W, Cp) leading-dim slice
            acc = acc + tap * wdw_ref[kh, kw]          # (1, Cp) lane-broadcast weight
    y1 = jnp.maximum(acc, 0.0)                         # conv1 ReLU (f32 on the VPU)

    # Pointwise 1x1 conv == (TH*W, Cp) @ (Cp, Cop) MXU matmul.
    # BN2 scale folded into wpw; bf16 operands, f32 accumulation.
    y2 = jnp.dot(y1.reshape(TH * W, Cp).astype(wpw_ref.dtype), wpw_ref[...],
                 preferred_element_type=jnp.float32)
    y2 = y2 + b2_ref[...]                              # BN2 bias (conv2 has no ReLU)

    if residual:
        # Reuse the centre width-shifted buffer for the residual (no extra relayout).
        ctr = xs[(KW - 1) // 2][((KH - 1) // 2) * dil: ((KH - 1) // 2) * dil + TH]
        y2 = y2 + ctr.reshape(TH * W, Cp)

    # Lane-dense store: Cop is a multiple of 128 lanes -> unmasked vst.
    o_ref[0] = y2.reshape(TH, W, Cop).astype(o_ref.dtype)


def sep_block_nhwc(x_nhwc, w_dw, g1, beta1, m1, v1, w_pw, g2, beta2, m2, v2, *,
                   kernel_size=3, stride=1, dilation=1, eps=1e-5,
                   matmul_dtype=jnp.bfloat16):
    """Fused SepBlock forward in the kernel-native NHWC layout."""
    # TODO(synk): stride > 1 (spatial subsampling in the depthwise conv) is not
    # implemented in the Pallas path; the residual branch requires stride == 1.
    assert stride == 1, "Pallas SepBlock kernel supports stride=1 only"
    assert kernel_size % 2 == 1

    N, H, W, Cin = x_nhwc.shape
    Cout = w_pw.shape[0]
    K = kernel_size
    pad = (K - 1) * dilation // 2
    residual = (Cin == Cout) and (stride == 1)

    Cp = _round_up(Cin, LANE)     # lane-padded input channels
    Cop = _round_up(Cout, LANE)   # lane-padded output channels

    # ---- fold BN(eval) into the conv weights (one-time wrapper-side work) ----
    s1 = g1 / jnp.sqrt(v1 + eps)                                        # (Cin,)
    bias1 = beta1 - m1 * s1
    wdw = jnp.transpose(w_dw[:, 0, :, :] * s1[:, None, None], (1, 2, 0))  # (K,K,Cin)
    wdw = jnp.pad(wdw, ((0, 0), (0, 0), (0, Cp - Cin)))
    wdw = wdw.reshape(K, K, 1, Cp).astype(jnp.float32)
    bias1 = jnp.pad(bias1, (0, Cp - Cin)).reshape(1, Cp).astype(jnp.float32)

    s2 = g2 / jnp.sqrt(v2 + eps)                                        # (Cout,)
    bias2 = beta2 - m2 * s2
    wpw = jnp.transpose(w_pw[:, :, 0, 0], (1, 0)) * s2[None, :]         # (Cin,Cout)
    wpw = jnp.pad(wpw, ((0, Cp - Cin), (0, Cop - Cout))).astype(matmul_dtype)
    bias2 = jnp.pad(bias2, (0, Cop - Cout)).reshape(1, Cop).astype(jnp.float32)

    # ---- activation: channel-pad to the lane width + spatial halo pad ----
    # (In a real NHWC network C is already a multiple of 128, so this is a no-op.)
    Hp = H + 2 * pad
    Wp = _round_up(W + 2 * pad, SUBLANE)
    x_pad = jnp.pad(x_nhwc.astype(jnp.float32),
                    ((0, 0), (pad, pad), (pad, Wp - W - pad), (0, Cp - Cin)))

    TH = _pick_tile_h(H)          # output-row tile
    nH = H // TH
    THp = TH + 2 * pad            # input rows needed per tile (with halo)

    kernel = functools.partial(
        _sep_block_kernel, TH=TH, THp=THp, W=W, KH=K, KW=K, dil=dilation,
        Cp=Cp, Cop=Cop, residual=residual)

    out = pl.pallas_call(
        kernel,
        out_shape=jax.ShapeDtypeStruct((N, H, W, Cop), jnp.float32),
        grid_spec=pltpu.PrefetchScalarGridSpec(
            num_scalar_prefetch=0,
            grid=(N, nH),
            in_specs=[
                # Padded image: block index ignores h -> stays resident in VMEM
                # across the row-tiles of one image (re-DMAed only per image).
                # For very large H*W*C this should become a halo'd H-tiled spec.
                pl.BlockSpec((1, Hp, Wp, Cp), lambda n, h: (n, 0, 0, 0)),
                # Weights / biases: constant index maps across the grid.
                pl.BlockSpec((K, K, 1, Cp), lambda n, h: (0, 0, 0, 0)),
                pl.BlockSpec((1, Cp), lambda n, h: (0, 0)),
                pl.BlockSpec((Cp, Cop), lambda n, h: (0, 0)),
                pl.BlockSpec((1, Cop), lambda n, h: (0, 0)),
            ],
            out_specs=pl.BlockSpec((1, TH, W, Cop), lambda n, h: (n, h, 0, 0)),
        ),
        compiler_params=pltpu.CompilerParams(
            dimension_semantics=("parallel", "parallel"),
            vmem_limit_bytes=32 * 1024 * 1024),
    )(x_pad, wdw, bias1, wpw, bias2)

    return out[..., :Cout]        # drop lane padding (no-op when Cout % 128 == 0)


def sep_block_nchw(x_nchw, *args, **kwargs):
    """NCHW (PyTorch-layout) wrapper: boundary transposes only, for parity with
    the reference. A real NHWC model should call sep_block_nhwc directly."""
    out = sep_block_nhwc(jnp.transpose(x_nchw, (0, 2, 3, 1)), *args, **kwargs)
    return jnp.transpose(out, (0, 3, 1, 2))


def _sep_block_reference(x, w_dw, g1, beta1, m1, v1, w_pw, g2, beta2, m2, v2, *,
                         kernel_size, stride, dilation, eps=1e-5):
    """Pure-JAX f32 reference of SepBlock.forward (eval-mode BN)."""
    Cin = x.shape[1]
    Cout = w_pw.shape[0]
    pad = (kernel_size - 1) * dilation // 2
    y = lax.conv_general_dilated(
        x, w_dw, window_strides=(stride, stride),
        padding=[(pad, pad), (pad, pad)], rhs_dilation=(dilation, dilation),
        dimension_numbers=("NCHW", "OIHW", "NCHW"), feature_group_count=Cin)
    s1 = g1 / jnp.sqrt(v1 + eps)
    y = y * s1.reshape(1, -1, 1, 1) + (beta1 - m1 * s1).reshape(1, -1, 1, 1)
    y = jnp.maximum(y, 0.0)
    y = lax.conv_general_dilated(
        y, w_pw, window_strides=(1, 1), padding=[(0, 0), (0, 0)],
        dimension_numbers=("NCHW", "OIHW", "NCHW"))
    s2 = g2 / jnp.sqrt(v2 + eps)
    y = y * s2.reshape(1, -1, 1, 1) + (beta2 - m2 * s2).reshape(1, -1, 1, 1)
    if Cin == Cout and stride == 1:
        y = y + x
    return y


if __name__ == "__main__":
    key = jax.random.PRNGKey(0)
    ks = jax.random.split(key, 12)

    # SepBlock(input_size=16, in_channels=4, out_channels=4, stride=1,
    #          kernel_size=3, dilation=1) -> residual branch active.
    N, C, H, W, K = 2, 4, 16, 16, 3

    x = jax.random.normal(ks[0], (N, C, H, W), dtype=jnp.float32)

    # conv1 (depthwise) weight (C, 1, K, K), kaiming fan_out-style scale.
    w_dw = jax.random.normal(ks[1], (C, 1, K, K), jnp.float32) * jnp.sqrt(2.0 / (K * K))
    g1 = 1.0 + 0.1 * jax.random.normal(ks[2], (C,), jnp.float32)
    beta1 = 0.1 * jax.random.normal(ks[3], (C,), jnp.float32)
    m1 = 0.05 * jax.random.normal(ks[4], (C,), jnp.float32)
    v1 = jnp.abs(1.0 + 0.1 * jax.random.normal(ks[5], (C,), jnp.float32))

    # conv2 (pointwise) weight (Cout, Cin, 1, 1).
    w_pw = jax.random.normal(ks[6], (C, C, 1, 1), jnp.float32) * jnp.sqrt(2.0 / C)
    g2 = 1.0 + 0.1 * jax.random.normal(ks[7], (C,), jnp.float32)
    beta2 = 0.1 * jax.random.normal(ks[8], (C,), jnp.float32)
    m2 = 0.05 * jax.random.normal(ks[9], (C,), jnp.float32)
    v2 = jnp.abs(1.0 + 0.1 * jax.random.normal(ks[10], (C,), jnp.float32))

    out = sep_block_nchw(x, w_dw, g1, beta1, m1, v1, w_pw, g2, beta2, m2, v2,
                         kernel_size=K, stride=1, dilation=1)
    out = jax.block_until_ready(out)

    ref = _sep_block_reference(x, w_dw, g1, beta1, m1, v1, w_pw, g2, beta2, m2, v2,
                               kernel_size=K, stride=1, dilation=1)

    assert out.shape == (N, C, H, W)
    # Tolerance accounts for bf16 MXU operands in the pointwise matmul
    # (f32 accumulation); depthwise/BN/residual math is exact f32.
    assert jnp.allclose(out, ref, atol=5e-2, rtol=5e-2), "mismatch vs reference"

    print("KERNEL_OK")
</pallas_src>

<mosaic_0001>
module attributes {stable_mosaic.version = 11 : i64} {
  func.func @_sep_block_kernel(%arg0: i32, %arg1: i32, %arg2: memref<1x18x24x128xf32, #tpu.memory_space<vmem>>, %arg3: memref<3x3x1x128xf32, #tpu.memory_space<vmem>>, %arg4: memref<1x128xf32, #tpu.memory_space<vmem>>, %arg5: memref<128x128xbf16, #tpu.memory_space<vmem>>, %arg6: memref<1x128xf32, #tpu.memory_space<vmem>>, %arg7: memref<1x8x16x128xf32, #tpu.memory_space<vmem>>) attributes {dimension_semantics = [#tpu.dimension_semantics<parallel>, #tpu.dimension_semantics<parallel>], iteration_bounds = array<i64: 2, 2>, scalar_prefetch = 0 : i64, scratch_operands = 0 : i64, tpu.core_type = #tpu.core_type<tc>, window_params = [{transform_indices = @transform_0, window_bounds = array<i64: 1, 18, 24, 128>}, {pipeline_mode = #tpu.pipeline_mode<synchronous>, transform_indices = @transform_1, window_bounds = array<i64: 3, 3, 1, 128>}, {pipeline_mode = #tpu.pipeline_mode<synchronous>, transform_indices = @transform_2, window_bounds = array<i64: 1, 128>}, {pipeline_mode = #tpu.pipeline_mode<synchronous>, transform_indices = @transform_3, window_bounds = array<i64: 128, 128>}, {pipeline_mode = #tpu.pipeline_mode<synchronous>, transform_indices = @transform_4, window_bounds = array<i64: 1, 128>}, {transform_indices = @transform_5, window_bounds = array<i64: 1, 8, 16, 128>}]} {
    %c8_i32 = arith.constant 8 : i32
    %0 = arith.muli %arg1, %c8_i32 : i32
    %1 = tpu.assume_multiple %0, 8 : i32
    %c0 = arith.constant 0 : index
    %2 = arith.index_cast %1 : i32 to index
    %c0_0 = arith.constant 0 : index
    %c0_1 = arith.constant 0 : index
    %3 = vector.load %arg2[%c0, %2, %c0_0, %c0_1] : memref<1x18x24x128xf32, #tpu.memory_space<vmem>>, vector<1x10x24x128xf32>
    %4 = vector.shape_cast %3 : vector<1x10x24x128xf32> to vector<10x24x128xf32>
    %5 = vector.extract_strided_slice %4 {offsets = [0, 0, 0], sizes = [10, 16, 128], strides = [1, 1, 1]} : vector<10x24x128xf32> to vector<10x16x128xf32>
    %6 = vector.extract_strided_slice %4 {offsets = [0, 1, 0], sizes = [10, 16, 128], strides = [1, 1, 1]} : vector<10x24x128xf32> to vector<10x16x128xf32>
    %7 = vector.extract_strided_slice %4 {offsets = [0, 2, 0], sizes = [10, 16, 128], strides = [1, 1, 1]} : vector<10x24x128xf32> to vector<10x16x128xf32>
    %c0_2 = arith.constant 0 : index
    %c0_3 = arith.constant 0 : index
    %8 = vector.load %arg4[%c0_2, %c0_3] : memref<1x128xf32, #tpu.memory_space<vmem>>, vector<1x128xf32>
    %9 = vector.shape_cast %8 : vector<1x128xf32> to vector<1x1x128xf32>
    %10 = vector.shape_cast %9 : vector<1x1x128xf32> to vector<1x1x128xf32>
    %11 = vector.broadcast %10 : vector<1x1x128xf32> to vector<8x16x128xf32>
    %12 = vector.extract_strided_slice %5 {offsets = [0, 0, 0], sizes = [8, 16, 128], strides = [1, 1, 1]} : vector<10x16x128xf32> to vector<8x16x128xf32>
    %c0_4 = arith.constant 0 : index
    %c0_5 = arith.constant 0 : index
    %c0_6 = arith.constant 0 : index
    %c0_7 = arith.constant 0 : index
    %13 = vector.load %arg3[%c0_4, %c0_5, %c0_6, %c0_7] : memref<3x3x1x128xf32, #tpu.memory_space<vmem>>, vector<1x1x1x128xf32>
    %14 = vector.shape_cast %13 : vector<1x1x1x128xf32> to vector<1x128xf32>
    %15 = vector.shape_cast %14 : vector<1x128xf32> to vector<1x1x128xf32>
    %16 = vector.broadcast %15 : vector<1x1x128xf32> to vector<8x16x128xf32>
    %17 = arith.mulf %12, %16 : vector<8x16x128xf32>
    %18 = arith.addf %11, %17 : vector<8x16x128xf32>
    %19 = vector.extract_strided_slice %5 {offsets = [1, 0, 0], sizes = [8, 16, 128], strides = [1, 1, 1]} : vector<10x16x128xf32> to vector<8x16x128xf32>
    %c1 = arith.constant 1 : index
    %c0_8 = arith.constant 0 : index
    %c0_9 = arith.constant 0 : index
    %c0_10 = arith.constant 0 : index
    %20 = vector.load %arg3[%c1, %c0_8, %c0_9, %c0_10] : memref<3x3x1x128xf32, #tpu.memory_space<vmem>>, vector<1x1x1x128xf32>
    %21 = vector.shape_cast %20 : vector<1x1x1x128xf32> to vector<1x128xf32>
    %22 = vector.shape_cast %21 : vector<1x128xf32> to vector<1x1x128xf32>
    %23 = vector.broadcast %22 : vector<1x1x128xf32> to vector<8x16x128xf32>
    %24 = arith.mulf %19, %23 : vector<8x16x128xf32>
    %25 = arith.addf %18, %24 : vector<8x16x128xf32>
    %26 = vector.extract_strided_slice %5 {offsets = [2, 0, 0], sizes = [8, 16, 128], strides = [1, 1, 1]} : vector<10x16x128xf32> to vector<8x16x128xf32>
    %c2 = arith.constant 2 : index
    %c0_11 = arith.constant 0 : index
    %c0_12 = arith.constant 0 : index
    %c0_13 = arith.constant 0 : index
    %27 = vector.load %arg3[%c2, %c0_11, %c0_12, %c0_13] : memref<3x3x1x128xf32, #tpu.memory_space<vmem>>, vector<1x1x1x128xf32>
    %28 = vector.shape_cast %27 : vector<1x1x1x128xf32> to vector<1x128xf32>
    %29 = vector.shape_cast %28 : vector<1x128xf32> to vector<1x1x128xf32>
    %30 = vector.broadcast %29 : vector<1x1x128xf32> to vector<8x16x128xf32>
    %31 = arith.mulf %26, %30 : vector<8x16x128xf32>
    %32 = arith.addf %25, %31 : vector<8x16x128xf32>
    %33 = vector.extract_strided_slice %6 {offsets = [0, 0, 0], sizes = [8, 16, 128], strides = [1, 1, 1]} : vector<10x16x128xf32> to vector<8x16x128xf32>
    %c0_14 = arith.constant 0 : index
    %c1_15 = arith.constant 1 : index
    %c0_16 = arith.constant 0 : index
    %c0_17 = arith.constant 0 : index
    %34 = vector.load %arg3[%c0_14, %c1_15, %c0_16, %c0_17] : memref<3x3x1x128xf32, #tpu.memory_space<vmem>>, vector<1x1x1x128xf32>
    %35 = vector.shape_cast %34 : vector<1x1x1x128xf32> to vector<1x128xf32>
    %36 = vector.shape_cast %35 : vector<1x128xf32> to vector<1x1x128xf32>
    %37 = vector.broadcast %36 : vector<1x1x128xf32> to vector<8x16x128xf32>
    %38 = arith.mulf %33, %37 : vector<8x16x128xf32>
    %39 = arith.addf %32, %38 : vector<8x16x128xf32>
    %40 = vector.extract_strided_slice %6 {offsets = [1, 0, 0], sizes = [8, 16, 128], strides = [1, 1, 1]} : vector<10x16x128xf32> to vector<8x16x128xf32>
    %c1_18 = arith.constant 1 : index
    %c1_19 = arith.constant 1 : index
    %c0_20 = arith.constant 0 : index
    %c0_21 = arith.constant 0 : index
    %41 = vector.load %arg3[%c1_18, %c1_19, %c0_20, %c0_21] : memref<3x3x1x128xf32, #tpu.memory_space<vmem>>, vector<1x1x1x128xf32>
    %42 = vector.shape_cast %41 : vector<1x1x1x128xf32> to vector<1x128xf32>
    %43 = vector.shape_cast %42 : vector<1x128xf32> to vector<1x1x128xf32>
    %44 = vector.broadcast %43 : vector<1x1x128xf32> to vector<8x16x128xf32>
    %45 = arith.mulf %40, %44 : vector<8x16x128xf32>
    %46 = arith.addf %39, %45 : vector<8x16x128xf32>
    %47 = vector.extract_strided_slice %6 {offsets = [2, 0, 0], sizes = [8, 16, 128], strides = [1, 1, 1]} : vector<10x16x128xf32> to vector<8x16x128xf32>
    %c2_22 = arith.constant 2 : index
    %c1_23 = arith.constant 1 : index
    %c0_24 = arith.constant 0 : index
    %c0_25 = arith.constant 0 : index
    %48 = vector.load %arg3[%c2_22, %c1_23, %c0_24, %c0_25] : memref<3x3x1x128xf32, #tpu.memory_space<vmem>>, vector<1x1x1x128xf32>
    %49 = vector.shape_cast %48 : vector<1x1x1x128xf32> to vector<1x128xf32>
    %50 = vector.shape_cast %49 : vector<1x128xf32> to vector<1x1x128xf32>
    %51 = vector.broadcast %50 : vector<1x1x128xf32> to vector<8x16x128xf32>
    %52 = arith.mulf %47, %51 : vector<8x16x128xf32>
    %53 = arith.addf %46, %52 : vector<8x16x128xf32>
    %54 = vector.extract_strided_slice %7 {offsets = [0, 0, 0], sizes = [8, 16, 128], strides = [1, 1, 1]} : vector<10x16x128xf32> to vector<8x16x128xf32>
    %c0_26 = arith.constant 0 : index
    %c2_27 = arith.constant 2 : index
    %c0_28 = arith.constant 0 : index
    %c0_29 = arith.constant 0 : index
    %55 = vector.load %arg3[%c0_26, %c2_27, %c0_28, %c0_29] : memref<3x3x1x128xf32, #tpu.memory_space<vmem>>, vector<1x1x1x128xf32>
    %56 = vector.shape_cast %55 : vector<1x1x1x128xf32> to vector<1x128xf32>
    %57 = vector.shape_cast %56 : vector<1x128xf32> to vector<1x1x128xf32>
    %58 = vector.broadcast %57 : vector<1x1x128xf32> to vector<8x16x128xf32>
    %59 = arith.mulf %54, %58 : vector<8x16x128xf32>
    %60 = arith.addf %53, %59 : vector<8x16x128xf32>
    %61 = vector.extract_strided_slice %7 {offsets = [1, 0, 0], sizes = [8, 16, 128], strides = [1, 1, 1]} : vector<10x16x128xf32> to vector<8x16x128xf32>
    %c1_30 = arith.constant 1 : index
    %c2_31 = arith.constant 2 : index
    %c0_32 = arith.constant 0 : index
    %c0_33 = arith.constant 0 : index
    %62 = vector.load %arg3[%c1_30, %c2_31, %c0_32, %c0_33] : memref<3x3x1x128xf32, #tpu.memory_space<vmem>>, vector<1x1x1x128xf32>
    %63 = vector.shape_cast %62 : vector<1x1x1x128xf32> to vector<1x128xf32>
    %64 = vector.shape_cast %63 : vector<1x128xf32> to vector<1x1x128xf32>
    %65 = vector.broadcast %64 : vector<1x1x128xf32> to vector<8x16x128xf32>
    %66 = arith.mulf %61, %65 : vector<8x16x128xf32>
    %67 = arith.addf %60, %66 : vector<8x16x128xf32>
    %68 = vector.extract_strided_slice %7 {offsets = [2, 0, 0], sizes = [8, 16, 128], strides = [1, 1, 1]} : vector<10x16x128xf32> to vector<8x16x128xf32>
    %c2_34 = arith.constant 2 : index
    %c2_35 = arith.constant 2 : index
    %c0_36 = arith.constant 0 : index
    %c0_37 = arith.constant 0 : index
    %69 = vector.load %arg3[%c2_34, %c2_35, %c0_36, %c0_37] : memref<3x3x1x128xf32, #tpu.memory_space<vmem>>, vector<1x1x1x128xf32>
    %70 = vector.shape_cast %69 : vector<1x1x1x128xf32> to vector<1x128xf32>
    %71 = vector.shape_cast %70 : vector<1x128xf32> to vector<1x1x128xf32>
    %72 = vector.broadcast %71 : vector<1x1x128xf32> to vector<8x16x128xf32>
    %73 = arith.mulf %68, %72 : vector<8x16x128xf32>
    %74 = arith.addf %67, %73 : vector<8x16x128xf32>
    %cst = arith.constant 0.000000e+00 : f32
    %75 = vector.broadcast %cst : f32 to vector<8x16x128xf32>
    %76 = arith.maximumf %74, %75 : vector<8x16x128xf32>
    %77 = vector.shape_cast %76 : vector<8x16x128xf32> to vector<128x128xf32>
    %78 = arith.truncf %77 : vector<128x128xf32> to vector<128x128xbf16>
    %c0_38 = arith.constant 0 : index
    %c0_39 = arith.constant 0 : index
    %79 = vector.load %arg5[%c0_38, %c0_39] : memref<128x128xbf16, #tpu.memory_space<vmem>>, vector<128x128xbf16>
    %cst_40 = arith.constant dense<0.000000e+00> : vector<128x128xf32>
    %80 = tpu.matmul %78, %79, %cst_40 {dimension_numbers = #tpu.dot_dimension_numbers<[1], [0], [0], [1], [0, 0, 1, 1], [], []>} : vector<128x128xbf16>, vector<128x128xbf16>, vector<128x128xf32> -> vector<128x128xf32>
    %c0_41 = arith.constant 0 : index
    %c0_42 = arith.constant 0 : index
    %81 = vector.load %arg6[%c0_41, %c0_42] : memref<1x128xf32, #tpu.memory_space<vmem>>, vector<1x128xf32>
    %82 = vector.broadcast %81 : vector<1x128xf32> to vector<128x128xf32>
    %83 = arith.addf %80, %82 : vector<128x128xf32>
    %84 = vector.extract_strided_slice %6 {offsets = [1, 0, 0], sizes = [8, 16, 128], strides = [1, 1, 1]} : vector<10x16x128xf32> to vector<8x16x128xf32>
    %85 = vector.shape_cast %84 : vector<8x16x128xf32> to vector<128x128xf32>
    %86 = arith.addf %83, %85 : vector<128x128xf32>
    %87 = vector.shape_cast %86 : vector<128x128xf32> to vector<8x16x128xf32>
    %c0_43 = arith.constant 0 : index
    %c0_44 = arith.constant 0 : index
    %c0_45 = arith.constant 0 : index
    %c0_46 = arith.constant 0 : index
    %88 = vector.load %arg7[%c0_43, %c0_44, %c0_45, %c0_46] : memref<1x8x16x128xf32, #tpu.memory_space<vmem>>, vector<1x8x16x128xf32>
    %89 = vector.shape_cast %88 : vector<1x8x16x128xf32> to vector<8x16x128xf32>
    %90 = vector.shape_cast %87 : vector<8x16x128xf32> to vector<1x8x16x128xf32>
    tpu.vector_store %arg7[%c0_43, %c0_44, %c0_45, %c0_46], %90 {strides = array<i32>} : memref<1x8x16x128xf32, #tpu.memory_space<vmem>>, vector<1x8x16x128xf32>,
    return
  }
  func.func @transform_0(%arg0: i32, %arg1: i32) -> (i32, i32, i32, i32) {
    %c0_i32 = arith.constant 0 : i32
    %c0_i32_0 = arith.constant 0 : i32
    %c0_i32_1 = arith.constant 0 : i32
    %c0_i32_2 = arith.constant 0 : i32
    return %arg0, %c0_i32, %c0_i32_0, %c0_i32_1 : i32, i32, i32, i32
  }
  func.func @transform_1(%arg0: i32, %arg1: i32) -> (i32, i32, i32, i32) {
    %c0_i32 = arith.constant 0 : i32
    %c0_i32_0 = arith.constant 0 : i32
    %c0_i32_1 = arith.constant 0 : i32
    %c0_i32_2 = arith.constant 0 : i32
    %c0_i32_3 = arith.constant 0 : i32
    return %c0_i32, %c0_i32_0, %c0_i32_1, %c0_i32_2 : i32, i32, i32, i32
  }
  func.func @transform_2(%arg0: i32, %arg1: i32) -> (i32, i32) {
    %c0_i32 = arith.constant 0 : i32
    %c0_i32_0 = arith.constant 0 : i32
    %c0_i32_1 = arith.constant 0 : i32
    return %c0_i32, %c0_i32_0 : i32, i32
  }
  func.func @transform_3(%arg0: i32, %arg1: i32) -> (i32, i32) {
    %c0_i32 = arith.constant 0 : i32
    %c0_i32_0 = arith.constant 0 : i32
    %c0_i32_1 = arith.constant 0 : i32
    return %c0_i32, %c0_i32_0 : i32, i32
  }
  func.func @transform_4(%arg0: i32, %arg1: i32) -> (i32, i32) {
    %c0_i32 = arith.constant 0 : i32
    %c0_i32_0 = arith.constant 0 : i32
    %c0_i32_1 = arith.constant 0 : i32
    return %c0_i32, %c0_i32_0 : i32, i32
  }
  func.func @transform_5(%arg0: i32, %arg1: i32) -> (i32, i32, i32, i32) {
    %c0_i32 = arith.constant 0 : i32
    %c0_i32_0 = arith.constant 0 : i32
    %c0_i32_1 = arith.constant 0 : i32
    return %arg0, %arg1, %c0_i32, %c0_i32_0 : i32, i32, i32, i32
  }
}

</mosaic_0001>

<llo_original>
// kernel: tpu_custom_call.1
$region0: #{tpu_custom_call.1}
  #allocation0 [shape = 'u32[]', space=smem, size = 0x4, offset = 0x4, fixed_abs, tag = 'smem constant byte address 0x4 - core index']
  #allocation1 [shape = 'u32[144,128]{1,0:T(1,128)}', space=vmem, size = 0x12000, scoped, tag = 'internal scratch']
  %s0 = inlined_call_operand.hbm [shape: f32[2,18,24,128], index: 0, kind: input, shape index: {}]
  %s1 = inlined_call_operand.hbm [shape: f32[3,3,1,128], index: 1, kind: input, shape index: {}]
  %s2 = inlined_call_operand.vmem [shape: f32[1,128], index: 2, kind: input, shape index: {}]
  %s3 = inlined_call_operand.hbm [shape: bf16[128,128], index: 3, kind: input, shape index: {}]
  %s4 = inlined_call_operand.vmem [shape: f32[1,128], index: 4, kind: input, shape index: {}]
  %s5 = inlined_call_operand.hbm [shape: f32[2,16,16,128], index: 5, kind: output, shape index: {}]
  %s6 = sld [smem:[#allocation0]]
  $region65: #{tpu_custom_call.1} parent=0
    _
  %s8 = ssub.s32 1, %s6
  %s9 = scalar_select 0, %s8, %s6
  $region1: #{tpu_custom_call.1} parent=0
    #allocation2 [shape = 'u8[442368]{0}', space=vmem, size = 0x6c000, scoped, tag = 'input window, operand 0']
    #allocation3 [shape = 's32[2]{0}', space=sflag, size = 0x8, scoped, tag = 'scoped memory for tpu_custom_call.1']
    #allocation4 [shape = 's32[2]{0}', space=sflag, size = 0x8, scoped, tag = 'scoped memory for tpu_custom_call.1']
    #allocation5 [shape = 'u8[4608]{0}', space=vmem, size = 0x1400, scoped, tag = 'input window, operand 1, single buffered']
    #allocation6 [shape = 's32[1]{0}', space=sflag, size = 0x4, scoped, tag = 'scoped memory for tpu_custom_call.1']
    #allocation7 [shape = 'u8[32768]{0}', space=vmem, size = 0x8000, scoped, tag = 'input window, operand 3, single buffered']
    #allocation8 [shape = 'u8[131072]{0}', space=vmem, size = 0x20000, scoped, tag = 'output window, operand 0']
    %10 = vsyncpa [#allocation3], 0
    %s11 = scalar_lea.sflag [#allocation3], 1
    %12 = vsyncpa %s11, 0
    %13 = vsyncpa [#allocation6], 0
    %14 = vsyncpa [#allocation4], 0
    %s15 = scalar_lea.sflag [#allocation4], 1
    %16 = vsyncpa %s15, 0
    loop: start=0, step=1, limit=6
    $region2: #{tpu_custom_call.1} parent=1 // loop_pre_header
      _
    $region3: #{tpu_custom_call.1} parent=1 // loop_header
      %s18 = sphi 0, %s22
      %p19 = scmp.ge.s32.totalorder %s18, 6
      %s25 = sphi 0, %s37
      %s26 = sphi 0, %s33
      %s27 = sphi 0, %s25
      %s28 = sphi 0, %s26
      %s29 = sphi 0, %s27
      %s30 = sphi 0, %s28
      %s40 = sphi 0, %s42
      %s43 = sphi 0, %s40
      %s44 = sphi 0, %s43
      %s60 = sphi 0, %s44
      %s64 = sphi 0, %s64
      %s66 = sphi 0, %s64
      %s67 = sphi 0, %s66
      %s81 = sphi 0, %s67
      %s85 = sphi 0, %s85
      %s87 = sphi 0, %s85
      %s88 = sphi 0, %s87
      %s102 = sphi 0, %s88
      %s106 = sphi 0, %s106
      %s108 = sphi 0, %s106
      %s109 = sphi 0, %s108
      %s123 = sphi 0, %s109
      %s127 = sphi 0, %s127
      %s129 = sphi 0, %s127
      %s130 = sphi 0, %s129
      %s144 = sphi 0, %s130
      %s152 = sphi 0, %s154
      %s155 = sphi 0, %s152
      %s156 = sphi 0, %s155
      %s172 = sphi 0, %s156
    $region4: #{tpu_custom_call.1} parent=1 // loop_header_branch
      %21 = sbr.rel (%p19) target = $region8
    $region5: #{tpu_custom_call.1} parent=1 // loop_body
      %s23 = ssub.s32 %s18, 1
      %s24 = ssub.s32 %s18, 2
      %s31 = sadd.s32 1, %s26
      %p32 = scmp.ge.s32.totalorder %s31, 2
      %s33 = scalar_select %p32, 0, %s31
      %s34 = sadd.s32 1, %s25
      %s35 = scalar_select %p32, %s34, %s25
      %p36 = scmp.ge.s32.totalorder %s35, 2
      %s37 = scalar_select %p36, 0, %s35
      %s38 = ssub.s32 %s25, %s37
      %p39 = scmp.eq.s32.totalorder %s38, 0
      %s41 = sadd.s32 %s40, 1
      %s42 = scalar_select %p39, %s40, %s41
      %p45 = pneg %p39
      %p46 = scmp.eq.s32.totalorder %s18, 3
      %p47 = por %p45, %p46
      %p48 = scmp.ne.s32.totalorder %s40, %s43
      %p49 = scmp.eq.s32.totalorder %s18, 0
      %p50 = por %p48, %p49
      %p51 = scmp.ne.s32.totalorder %s40, %s43
      %p52 = scmp.eq.s32.totalorder %s23, 3
      %p53 = por %p51, %p52
      %p54 = scmp.ne.s32.totalorder %s43, %s44
      %p55 = scmp.eq.s32.totalorder %s23, 0
      %p56 = por %p54, %p55
      %p57 = scmp.ne.s32.totalorder %s43, %s44
      %p58 = scmp.eq.s32.totalorder %s24, 3
      %p59 = por %p57, %p58
      %p61 = scmp.ne.s32.totalorder %s44, %s60
      %p62 = scmp.eq.s32.totalorder %s24, 0
      %p63 = por %p61, %p62
      %s65 = sadd.s32 %s64, 1
      %p68 = scmp.eq.s32.totalorder %s18, 3
      %p69 = scmp.ne.s32.totalorder %s64, %s66
      %p70 = scmp.eq.s32.totalorder %s18, 0
      %p71 = por %p69, %p70
      %p72 = scmp.ne.s32.totalorder %s64, %s66
      %p73 = scmp.eq.s32.totalorder %s23, 3
      %p74 = por %p72, %p73
      %p75 = scmp.ne.s32.totalorder %s66, %s67
      %p76 = scmp.eq.s32.totalorder %s23, 0
      %p77 = por %p75, %p76
      %p78 = scmp.ne.s32.totalorder %s66, %s67
      %p79 = scmp.eq.s32.totalorder %s24, 3
      %p80 = por %p78, %p79
      %p82 = scmp.ne.s32.totalorder %s67, %s81
      %p83 = scmp.eq.s32.totalorder %s24, 0
      %p84 = por %p82, %p83
      %s86 = sadd.s32 %s85, 1
      %p89 = scmp.eq.s32.totalorder %s18, 3
      %p90 = scmp.ne.s32.totalorder %s85, %s87
      %p91 = scmp.eq.s32.totalorder %s18, 0
      %p92 = por %p90, %p91
      %p93 = scmp.ne.s32.totalorder %s85, %s87
      %p94 = scmp.eq.s32.totalorder %s23, 3
      %p95 = por %p93, %p94
      %p96 = scmp.ne.s32.totalorder %s87, %s88
      %p97 = scmp.eq.s32.totalorder %s23, 0
      %p98 = por %p96, %p97
      %p99 = scmp.ne.s32.totalorder %s87, %s88
      %p100 = scmp.eq.s32.totalorder %s24, 3
      %p101 = por %p99, %p100
      %p103 = scmp.ne.s32.totalorder %s88, %s102
      %p104 = scmp.eq.s32.totalorder %s24, 0
      %p105 = por %p103, %p104
      %s107 = sadd.s32 %s106, 1
      %p110 = scmp.eq.s32.totalorder %s18, 3
      %p111 = scmp.ne.s32.totalorder %s106, %s108
      %p112 = scmp.eq.s32.totalorder %s18, 0
      %p113 = por %p111, %p112
      %p114 = scmp.ne.s32.totalorder %s106, %s108
      %p115 = scmp.eq.s32.totalorder %s23, 3
      %p116 = por %p114, %p115
      %p117 = scmp.ne.s32.totalorder %s108, %s109
      %p118 = scmp.eq.s32.totalorder %s23, 0
      %p119 = por %p117, %p118
      %p120 = scmp.ne.s32.totalorder %s108, %s109
      %p121 = scmp.eq.s32.totalorder %s24, 3
      %p122 = por %p120, %p121
      %p124 = scmp.ne.s32.totalorder %s109, %s123
      %p125 = scmp.eq.s32.totalorder %s24, 0
      %p126 = por %p124, %p125
      %s128 = sadd.s32 %s127, 1
      %p131 = scmp.eq.s32.totalorder %s18, 3
      %p132 = scmp.ne.s32.totalorder %s127, %s129
      %p133 = scmp.eq.s32.totalorder %s18, 0
      %p134 = por %p132, %p133
      %p135 = scmp.ne.s32.totalorder %s127, %s129
      %p136 = scmp.eq.s32.totalorder %s23, 3
      %p137 = por %p135, %p136
      %p138 = scmp.ne.s32.totalorder %s129, %s130
      %p139 = scmp.eq.s32.totalorder %s23, 0
      %p140 = por %p138, %p139
      %p141 = scmp.ne.s32.totalorder %s129, %s130
      %p142 = scmp.eq.s32.totalorder %s24, 3
      %p143 = por %p141, %p142
      %p145 = scmp.ne.s32.totalorder %s130, %s144
      %p146 = scmp.eq.s32.totalorder %s24, 0
      %p147 = por %p145, %p146
      %s148 = ssub.s32 %s25, %s37
      %s149 = ssub.s32 %s26, %s33
      %s150 = sor.u32 %s148, %s149
      %p151 = scmp.eq.s32.totalorder %s150, 0
      %s153 = sadd.s32 %s152, 1
      %s154 = scalar_select %p151, %s152, %s153
      %p157 = pneg %p151
      %p158 = scmp.eq.s32.totalorder %s18, 3
      %p159 = por %p157, %p158
      %p160 = scmp.ne.s32.totalorder %s152, %s155
      %p161 = scmp.eq.s32.totalorder %s18, 0
      %p162 = por %p160, %p161
      %p163 = scmp.ne.s32.totalorder %s152, %s155
      %p164 = scmp.eq.s32.totalorder %s23, 3
      %p165 = por %p163, %p164
      %p166 = scmp.ne.s32.totalorder %s155, %s156
      %p167 = scmp.eq.s32.totalorder %s23, 0
      %p168 = por %p166, %p167
      %p169 = scmp.ne.s32.totalorder %s155, %s156
      %p170 = scmp.eq.s32.totalorder %s24, 3
      %p171 = por %p169, %p170
      %p173 = scmp.ne.s32.totalorder %s156, %s172
      %p174 = scmp.eq.s32.totalorder %s24, 0
      %p175 = por %p173, %p174
      %p176 = scmp.le.s32.totalorder 1, %s18
      %p177 = scmp.lt.s32.totalorder %s18, 5
      %p178 = pnand %p176, %p177
      %p179 = pneg %p178
      // Predicated region
      $region9: #{tpu_custom_call.1} parent=5 // pred_check
        _
      $region10: #{tpu_custom_call.1} parent=5 // pred_check_branch
        %181 = sbr.rel (%p178) target = $region12
      $region11: #{tpu_custom_call.1} parent=5 // pred_region
        %s182 = ssub.s32 %s18, 1
        // Predicated region
        $region13: #{tpu_custom_call.1} parent=11 // pred_check
          %p183 = pneg %p77
        $region14: #{tpu_custom_call.1} parent=11 // pred_check_branch
          %185 = sbr.rel (%p183) target = $region16
        $region15: #{tpu_custom_call.1} parent=11 // pred_region
          %s187 = ssub.s32 144, 144
          %188 = vsyncadd [#allocation6], %s187
          %s189 = sshll.u32 [#allocation5], 4
          %s190 = int_to_ptr.vmem [resolvable:$true] %s189
          %195 = dma.hbm_to_vmem [thread:$0]  %s1, 144, %s190, [#allocation6], 16, 16, 1
        $region16: #{tpu_custom_call.1} parent=11 // pred_fallthru
          _
        // Predicated region
        $region17: #{tpu_custom_call.1} parent=11 // pred_check
          %p196 = pneg %p98
        $region18: #{tpu_custom_call.1} parent=11 // pred_check_branch
          %198 = sbr.rel (%p196) target = $region20
        $region19: #{tpu_custom_call.1} parent=11 // pred_region
          _
        $region20: #{tpu_custom_call.1} parent=11 // pred_fallthru
          _
        // Predicated region
        $region21: #{tpu_custom_call.1} parent=11 // pred_check
          %p199 = pneg %p119
        $region22: #{tpu_custom_call.1} parent=11 // pred_check_branch
          %201 = sbr.rel (%p199) target = $region24
        $region23: #{tpu_custom_call.1} parent=11 // pred_region
          %s203 = ssub.s32 1024, 1024
          %204 = vsyncadd [#allocation6], %s203
          %s205 = sshll.u32 [#allocation7], 4
          %s206 = int_to_ptr.vmem [resolvable:$true] %s205
          %211 = dma.hbm_to_vmem [thread:$0]  %s3, 1024, %s206, [#allocation6], 64, 64, 4
        $region24: #{tpu_custom_call.1} parent=11 // pred_fallthru
          _
        // Predicated region
        $region25: #{tpu_custom_call.1} parent=11 // pred_check
          %p212 = pneg %p140
        $region26: #{tpu_custom_call.1} parent=11 // pred_check_branch
          %214 = sbr.rel (%p212) target = $region28
        $region27: #{tpu_custom_call.1} parent=11 // pred_region
          _
        $region28: #{tpu_custom_call.1} parent=11 // pred_fallthru
          _
      $region12: #{tpu_custom_call.1} parent=5 // pred_fallthru
        _
      %p215 = scmp.lt.s32.totalorder %s18, 4
      // Predicated region
      $region29: #{tpu_custom_call.1} parent=5 // pred_check
        %p216 = pneg %p215
      $region30: #{tpu_custom_call.1} parent=5 // pred_check_branch
        %218 = sbr.rel (%p216) target = $region32
      $region31: #{tpu_custom_call.1} parent=5 // pred_region
        // Predicated region
        $region33: #{tpu_custom_call.1} parent=31 // pred_check
          %p219 = pneg %p50
        $region34: #{tpu_custom_call.1} parent=31 // pred_check_branch
          %221 = sbr.rel (%p219) target = $region36
        $region35: #{tpu_custom_call.1} parent=31 // pred_region
          %s222 = sand.u32 %s40, 1
          %s223 = scalar_lea.sflag [#allocation3], %s222
          %s224 = sand.u32 %s40, 1
          %s225 = smul.addr %s224, 432
          %s226 = scalar_lea.vmem [#allocation2], %s225
          %s228 = ssub.s32 6912, 6912
          %229 = vsyncadd %s223, %s228
          %s230 = smul.addr %s25, 54
          %s231 = smul.addr %s230, 128
          %s232 = scalar_lea.hbm %s0, %s231
          %s233 = sshll.u32 %s226, 4
          %s234 = int_to_ptr.vmem [resolvable:$true] %s233
          %239 = dma.hbm_to_vmem [thread:$0]  %s232, 6912, %s234, %s223, 128, 128, 8
        $region36: #{tpu_custom_call.1} parent=31 // pred_fallthru
          _
      $region32: #{tpu_custom_call.1} parent=5 // pred_fallthru
        _
      %p240 = scmp.le.s32.totalorder 1, %s18
      %p241 = scmp.lt.s32.totalorder %s18, 5
      %p242 = pnand %p240, %p241
      %p243 = pneg %p242
      // Predicated region
      $region37: #{tpu_custom_call.1} parent=5 // pred_check
        _
      $region38: #{tpu_custom_call.1} parent=5 // pred_check_branch
        %245 = sbr.rel (%p242) target = $region40
      $region39: #{tpu_custom_call.1} parent=5 // pred_region
        %s246 = ssub.s32 %s18, 1
        %s247 = sand.u32 %s43, 1
        %s248 = scalar_lea.sflag [#allocation3], %s247
        %s249 = sand.u32 %s43, 1
        %s250 = smul.addr %s249, 432
        %s251 = scalar_lea.vmem [#allocation2], %s250
        // Predicated region
        $region41: #{tpu_custom_call.1} parent=39 // pred_check
          %p252 = pneg %p56
        $region42: #{tpu_custom_call.1} parent=39 // pred_check_branch
          %254 = sbr.rel (%p252) target = $region44
        $region43: #{tpu_custom_call.1} parent=39 // pred_region
          %255 = dma.done %s248, 6912
        $region44: #{tpu_custom_call.1} parent=39 // pred_fallthru
          _
        // Predicated region
        $region45: #{tpu_custom_call.1} parent=39 // pred_check
          %p256 = pneg %p77
        $region46: #{tpu_custom_call.1} parent=39 // pred_check_branch
          %258 = sbr.rel (%p256) target = $region48
        $region47: #{tpu_custom_call.1} parent=39 // pred_region
          %259 = dma.done [#allocation6], 144
        $region48: #{tpu_custom_call.1} parent=39 // pred_fallthru
          _
        // Predicated region
        $region49: #{tpu_custom_call.1} parent=39 // pred_check
          %p260 = pneg %p119
        $region50: #{tpu_custom_call.1} parent=39 // pred_check_branch
          %262 = sbr.rel (%p260) target = $region52
        $region51: #{tpu_custom_call.1} parent=39 // pred_region
          %263 = dma.done [#allocation6], 1024
        $region52: #{tpu_custom_call.1} parent=39 // pred_fallthru
          _
        %s264 = sand.u32 %s43, 1
        %s265 = scalar_lea.sflag [#allocation3], %s264
        %s266 = sand.u32 %s43, 1
        %s267 = smul.addr %s266, 432
        %s268 = scalar_lea.vmem [#allocation2], %s267
        %p269 = pneg %p56
        %p270 = pneg %p53
        %p271 = pneg %p77
        %p272 = pneg %p74
        %p273 = pneg %p98
        %p274 = pneg %p95
        %p275 = pneg %p119
        %p276 = pneg %p116
        %p277 = pneg %p140
        %p278 = pneg %p137
        %p279 = pneg %p168
        %p280 = pneg %p165
        %s281 = sand.u32 %s155, 1
        %s282 = scalar_lea.sflag [#allocation4], %s281
        %s283 = sand.u32 %s155, 1
        %s284 = smul.addr %s283, 128
        %s285 = scalar_lea.vmem [#allocation8], %s284
        %s286 = smul.u32 8, %s28
        %s288 = smul.u32 %s28, 8
        %s289 = smul.u32 %s288, 24
        %s290 = scalar_lea.vmem %s251, %s289 [#allocation2]
        %v291 = vld [vmem:[%s290] sm:$0xff]
        %v292 = vld [vmem:[%s290 + $0x8] sm:$0xff]
        %v293 = vld [vmem:[%s290 + $0x10] sm:$0xff]
        %v294 = vld [vmem:[%s290 + $0x18] sm:$0xff]
        %v295 = vld [vmem:[%s290 + $0x20] sm:$0xff]
        %v296 = vld [vmem:[%s290 + $0x28] sm:$0xff]
        %v297 = vld [vmem:[%s290 + $0x30] sm:$0xff]
        %v298 = vld [vmem:[%s290 + $0x38] sm:$0xff]
        %v299 = vld [vmem:[%s290 + $0x40] sm:$0xff]
        %v300 = vld [vmem:[%s290 + $0x48] sm:$0xff]
        %v301 = vld [vmem:[%s290 + $0x50] sm:$0xff]
        %v302 = vld [vmem:[%s290 + $0x58] sm:$0xff]
        %v303 = vld [vmem:[%s290 + $0x60] sm:$0xff]
        %v304 = vld [vmem:[%s290 + $0x68] sm:$0xff]
        %v305 = vld [vmem:[%s290 + $0x70] sm:$0xff]
        %v306 = vld [vmem:[%s290 + $0x78] sm:$0xff]
        %v307 = vld [vmem:[%s290 + $0x80] sm:$0xff]
        %v308 = vld [vmem:[%s290 + $0x88] sm:$0xff]
        %v309 = vld [vmem:[%s290 + $0x90] sm:$0xff]
        %v310 = vld [vmem:[%s290 + $0x98] sm:$0xff]
        %v311 = vld [vmem:[%s290 + $0xa0] sm:$0xff]
        %v312 = vld [vmem:[%s290 + $0xa8] sm:$0xff]
        %v313 = vld [vmem:[%s290 + $0xb0] sm:$0xff]
        %v314 = vld [vmem:[%s290 + $0xb8] sm:$0xff]
        %v315 = vld [vmem:[%s290 + $0xc0] sm:$0xff]
        %v316 = vld [vmem:[%s290 + $0xc8] sm:$0xff]
        %v317 = vld [vmem:[%s290 + $0xd0] sm:$0xff]
        %v318 = vld [vmem:[%s290 + $0xd8] sm:$0xff]
        %v319 = vld [vmem:[%s290 + $0xe0] sm:$0xff]
        %v320 = vld [vmem:[%s290 + $0xe8] sm:$0xff]
        %v321 = vld [vmem:[%s2] sm:$0x1]
        %v323 = vlaneseq
        %v324 = vshrl.u32 %v323, 7
        %v325 = vsub.s32 0, %v324
        %v326 = vrot.slane %v321, %v325
        %v328 = vld [vmem:[#allocation5] sm:$0x1]
        %v330 = vlaneseq
        %v331 = vshrl.u32 %v330, 7
        %v332 = vsub.s32 0, %v331
        %v333 = vrot.slane %v328, %v332
        %v335 = vmul.f32 %v291, %v333
        %v336 = vmul.f32 %v292, %v333
        %v337 = vmul.f32 %v294, %v333
        %v338 = vmul.f32 %v295, %v333
        %v339 = vmul.f32 %v297, %v333
        %v340 = vmul.f32 %v298, %v333
        %v341 = vmul.f32 %v300, %v333
        %v342 = vmul.f32 %v301, %v333
        %v343 = vmul.f32 %v303, %v333
        %v344 = vmul.f32 %v304, %v333
        %v345 = vmul.f32 %v306, %v333
        %v346 = vmul.f32 %v307, %v333
        %v347 = vmul.f32 %v309, %v333
        %v348 = vmul.f32 %v310, %v333
        %v349 = vmul.f32 %v312, %v333
        %v350 = vmul.f32 %v313, %v333
        %v351 = vadd.f32 %v326, %v335
        %v352 = vadd.f32 %v326, %v336
        %v353 = vadd.f32 %v326, %v337
        %v354 = vadd.f32 %v326, %v338
        %v355 = vadd.f32 %v326, %v339
        %v356 = vadd.f32 %v326, %v340
        %v357 = vadd.f32 %v326, %v341
        %v358 = vadd.f32 %v326, %v342
        %v359 = vadd.f32 %v326, %v343
        %v360 = vadd.f32 %v326, %v344
        %v361 = vadd.f32 %v326, %v345
        %v362 = vadd.f32 %v326, %v346
        %v363 = vadd.f32 %v326, %v347
        %v364 = vadd.f32 %v326, %v348
        %v365 = vadd.f32 %v326, %v349
        %v366 = vadd.f32 %v326, %v350
        %s367 = scalar_lea.vmem [#allocation5], 3
        %v368 = vld [vmem:[%s367] sm:$0x1]
        %v370 = vlaneseq
        %v371 = vshrl.u32 %v370, 7
        %v372 = vsub.s32 0, %v371
        %v373 = vrot.slane %v368, %v372
        %v375 = vmul.f32 %v294, %v373
        %v376 = vmul.f32 %v295, %v373
        %v377 = vmul.f32 %v297, %v373
        %v378 = vmul.f32 %v298, %v373
        %v379 = vmul.f32 %v300, %v373
        %v380 = vmul.f32 %v301, %v373
        %v381 = vmul.f32 %v303, %v373
        %v382 = vmul.f32 %v304, %v373
        %v383 = vmul.f32 %v306, %v373
        %v384 = vmul.f32 %v307, %v373
        %v385 = vmul.f32 %v309, %v373
        %v386 = vmul.f32 %v310, %v373
        %v387 = vmul.f32 %v312, %v373
        %v388 = vmul.f32 %v313, %v373
        %v389 = vmul.f32 %v315, %v373
        %v390 = vmul.f32 %v316, %v373
        %v391 = vadd.f32 %v351, %v375
        %v392 = vadd.f32 %v352, %v376
        %v393 = vadd.f32 %v353, %v377
        %v394 = vadd.f32 %v354, %v378
        %v395 = vadd.f32 %v355, %v379
        %v396 = vadd.f32 %v356, %v380
        %v397 = vadd.f32 %v357, %v381
        %v398 = vadd.f32 %v358, %v382
        %v399 = vadd.f32 %v359, %v383
        %v400 = vadd.f32 %v360, %v384
        %v401 = vadd.f32 %v361, %v385
        %v402 = vadd.f32 %v362, %v386
        %v403 = vadd.f32 %v363, %v387
        %v404 = vadd.f32 %v364, %v388
        %v405 = vadd.f32 %v365, %v389
        %v406 = vadd.f32 %v366, %v390
        %s407 = scalar_lea.vmem [#allocation5], 6
        %v408 = vld [vmem:[%s407] sm:$0x1]
        %v410 = vlaneseq
        %v411 = vshrl.u32 %v410, 7
        %v412 = vsub.s32 0, %v411
        %v413 = vrot.slane %v408, %v412
        %v415 = vmul.f32 %v297, %v413
        %v416 = vmul.f32 %v298, %v413
        %v417 = vmul.f32 %v300, %v413
        %v418 = vmul.f32 %v301, %v413
        %v419 = vmul.f32 %v303, %v413
        %v420 = vmul.f32 %v304, %v413
        %v421 = vmul.f32 %v306, %v413
        %v422 = vmul.f32 %v307, %v413
        %v423 = vmul.f32 %v309, %v413
        %v424 = vmul.f32 %v310, %v413
        %v425 = vmul.f32 %v312, %v413
        %v426 = vmul.f32 %v313, %v413
        %v427 = vmul.f32 %v315, %v413
        %v428 = vmul.f32 %v316, %v413
        %v429 = vmul.f32 %v318, %v413
        %v430 = vmul.f32 %v319, %v413
        %v431 = vadd.f32 %v391, %v415
        %v432 = vadd.f32 %v392, %v416
        %v433 = vadd.f32 %v393, %v417
        %v434 = vadd.f32 %v394, %v418
        %v435 = vadd.f32 %v395, %v419
        %v436 = vadd.f32 %v396, %v420
        %v437 = vadd.f32 %v397, %v421
        %v438 = vadd.f32 %v398, %v422
        %v439 = vadd.f32 %v399, %v423
        %v440 = vadd.f32 %v400, %v424
        %v441 = vadd.f32 %v401, %v425
        %v442 = vadd.f32 %v402, %v426
        %v443 = vadd.f32 %v403, %v427
        %v444 = vadd.f32 %v404, %v428
        %v445 = vadd.f32 %v405, %v429
        %v446 = vadd.f32 %v406, %v430
        %s447 = scalar_lea.vmem [#allocation5], 1
        %v448 = vld [vmem:[%s447] sm:$0x1]
        %v450 = vlaneseq
        %v451 = vshrl.u32 %v450, 7
        %v452 = vsub.s32 0, %v451
        %v453 = vrot.slane %v448, %v452
        %v455 = vmul.f32 %v291, %v453
        %v456 = vmul.f32 %v292, %v453
        %v457 = vmul.f32 %v293, %v453
        %v458 = vmul.f32 %v294, %v453
        %v459 = vmul.f32 %v295, %v453
        %v460 = vmul.f32 %v296, %v453
        %v461 = vmul.f32 %v297, %v453
        %v462 = vmul.f32 %v298, %v453
        %v463 = vmul.f32 %v299, %v453
        %v464 = vmul.f32 %v300, %v453
        %v465 = vmul.f32 %v301, %v453
        %v466 = vmul.f32 %v302, %v453
        %v467 = vmul.f32 %v303, %v453
        %v468 = vmul.f32 %v304, %v453
        %v469 = vmul.f32 %v305, %v453
        %v470 = vmul.f32 %v306, %v453
        %v471 = vmul.f32 %v307, %v453
        %v472 = vmul.f32 %v308, %v453
        %v473 = vmul.f32 %v309, %v453
        %v474 = vmul.f32 %v310, %v453
        %v475 = vmul.f32 %v311, %v453
        %v476 = vmul.f32 %v312, %v453
        %v477 = vmul.f32 %v313, %v453
        %v478 = vmul.f32 %v314, %v453
        %vm503 = vcmask 1046528
        %v504 = vrot.slane %v455, 1
        %v505 = vrot.slane %v456, 1
        %v506 = vsel %vm503, %v504, %v505
        %v507 = vrot.slane %v457, 1
        %v508 = vsel %vm503, %v505, %v507
        %v509 = vrot.slane %v458, 1
        %v510 = vrot.slane %v459, 1
        %v511 = vsel %vm503, %v509, %v510
        %v512 = vrot.slane %v460, 1
        %v513 = vsel %vm503, %v510, %v512
        %v514 = vrot.slane %v461, 1
        %v515 = vrot.slane %v462, 1
        %v516 = vsel %vm503, %v514, %v515
        %v517 = vrot.slane %v463, 1
        %v518 = vsel %vm503, %v515, %v517
        %v519 = vrot.slane %v464, 1
        %v520 = vrot.slane %v465, 1
        %v521 = vsel %vm503, %v519, %v520
        %v522 = vrot.slane %v466, 1
        %v523 = vsel %vm503, %v520, %v522
        %v524 = vrot.slane %v467, 1
        %v525 = vrot.slane %v468, 1
        %v526 = vsel %vm503, %v524, %v525
        %v527 = vrot.slane %v469, 1
        %v528 = vsel %vm503, %v525, %v527
        %v529 = vrot.slane %v470, 1
        %v530 = vrot.slane %v471, 1
        %v531 = vsel %vm503, %v529, %v530
        %v532 = vrot.slane %v472, 1
        %v533 = vsel %vm503, %v530, %v532
        %v534 = vrot.slane %v473, 1
        %v535 = vrot.slane %v474, 1
        %v536 = vsel %vm503, %v534, %v535
        %v537 = vrot.slane %v475, 1
        %v538 = vsel %vm503, %v535, %v537
        %v539 = vrot.slane %v476, 1
        %v540 = vrot.slane %v477, 1
        %v541 = vsel %vm503, %v539, %v540
        %v542 = vrot.slane %v478, 1
        %v543 = vsel %vm503, %v540, %v542
        %v560 = vadd.f32 %v431, %v506
        %v561 = vadd.f32 %v432, %v508
        %v562 = vadd.f32 %v433, %v511
        %v563 = vadd.f32 %v434, %v513
        %v564 = vadd.f32 %v435, %v516
        %v565 = vadd.f32 %v436, %v518
        %v566 = vadd.f32 %v437, %v521
        %v567 = vadd.f32 %v438, %v523
        %v568 = vadd.f32 %v439, %v526
        %v569 = vadd.f32 %v440, %v528
        %v570 = vadd.f32 %v441, %v531
        %v571 = vadd.f32 %v442, %v533
        %v572 = vadd.f32 %v443, %v536
        %v573 = vadd.f32 %v444, %v538
        %v574 = vadd.f32 %v445, %v541
        %v575 = vadd.f32 %v446, %v543
        %s576 = scalar_lea.vmem [#allocation5], 4
        %v577 = vld [vmem:[%s576] sm:$0x1]
        %v579 = vlaneseq
        %v580 = vshrl.u32 %v579, 7
        %v581 = vsub.s32 0, %v580
        %v582 = vrot.slane %v577, %v581
        %v584 = vmul.f32 %v294, %v582
        %v585 = vmul.f32 %v295, %v582
        %v586 = vmul.f32 %v296, %v582
        %v587 = vmul.f32 %v297, %v582
        %v588 = vmul.f32 %v298, %v582
        %v589 = vmul.f32 %v299, %v582
        %v590 = vmul.f32 %v300, %v582
        %v591 = vmul.f32 %v301, %v582
        %v592 = vmul.f32 %v302, %v582
        %v593 = vmul.f32 %v303, %v582
        %v594 = vmul.f32 %v304, %v582
        %v595 = vmul.f32 %v305, %v582
        %v596 = vmul.f32 %v306, %v582
        %v597 = vmul.f32 %v307, %v582
        %v598 = vmul.f32 %v308, %v582
        %v599 = vmul.f32 %v309, %v582
        %v600 = vmul.f32 %v310, %v582
        %v601 = vmul.f32 %v311, %v582
        %v602 = vmul.f32 %v312, %v582
        %v603 = vmul.f32 %v313, %v582
        %v604 = vmul.f32 %v314, %v582
        %v605 = vmul.f32 %v315, %v582
        %v606 = vmul.f32 %v316, %v582
        %v607 = vmul.f32 %v317, %v582
        %v632 = vrot.slane %v584, 1
        %v633 = vrot.slane %v585, 1
        %v634 = vsel %vm503, %v632, %v633
        %v635 = vrot.slane %v586, 1
        %v636 = vsel %vm503, %v633, %v635
        %v637 = vrot.slane %v587, 1
        %v638 = vrot.slane %v588, 1
        %v639 = vsel %vm503, %v637, %v638
        %v640 = vrot.slane %v589, 1
        %v641 = vsel %vm503, %v638, %v640
        %v642 = vrot.slane %v590, 1
        %v643 = vrot.slane %v591, 1
        %v644 = vsel %vm503, %v642, %v643
        %v645 = vrot.slane %v592, 1
        %v646 = vsel %vm503, %v643, %v645
        %v647 = vrot.slane %v593, 1
        %v648 = vrot.slane %v594, 1
        %v649 = vsel %vm503, %v647, %v648
        %v650 = vrot.slane %v595, 1
        %v651 = vsel %vm503, %v648, %v650
        %v652 = vrot.slane %v596, 1
        %v653 = vrot.slane %v597, 1
        %v654 = vsel %vm503, %v652, %v653
        %v655 = vrot.slane %v598, 1
        %v656 = vsel %vm503, %v653, %v655
        %v657 = vrot.slane %v599, 1
        %v658 = vrot.slane %v600, 1
        %v659 = vsel %vm503, %v657, %v658
        %v660 = vrot.slane %v601, 1
        %v661 = vsel %vm503, %v658, %v660
        %v662 = vrot.slane %v602, 1
        %v663 = vrot.slane %v603, 1
        %v664 = vsel %vm503, %v662, %v663
        %v665 = vrot.slane %v604, 1
        %v666 = vsel %vm503, %v663, %v665
        %v667 = vrot.slane %v605, 1
        %v668 = vrot.slane %v606, 1
        %v669 = vsel %vm503, %v667, %v668
        %v670 = vrot.slane %v607, 1
        %v671 = vsel %vm503, %v668, %v670
        %v688 = vadd.f32 %v560, %v634
        %v689 = vadd.f32 %v561, %v636
        %v690 = vadd.f32 %v562, %v639
        %v691 = vadd.f32 %v563, %v641
        %v692 = vadd.f32 %v564, %v644
        %v693 = vadd.f32 %v565, %v646
        %v694 = vadd.f32 %v566, %v649
        %v695 = vadd.f32 %v567, %v651
        %v696 = vadd.f32 %v568, %v654
        %v697 = vadd.f32 %v569, %v656
        %v698 = vadd.f32 %v570, %v659
        %v699 = vadd.f32 %v571, %v661
        %v700 = vadd.f32 %v572, %v664
        %v701 = vadd.f32 %v573, %v666
        %v702 = vadd.f32 %v574, %v669
        %v703 = vadd.f32 %v575, %v671
        %s704 = scalar_lea.vmem [#allocation5], 7
        %v705 = vld [vmem:[%s704] sm:$0x1]
        %v707 = vlaneseq
        %v708 = vshrl.u32 %v707, 7
        %v709 = vsub.s32 0, %v708
        %v710 = vrot.slane %v705, %v709
        %v712 = vmul.f32 %v297, %v710
        %v713 = vmul.f32 %v298, %v710
        %v714 = vmul.f32 %v299, %v710
        %v715 = vmul.f32 %v300, %v710
        %v716 = vmul.f32 %v301, %v710
        %v717 = vmul.f32 %v302, %v710
        %v718 = vmul.f32 %v303, %v710
        %v719 = vmul.f32 %v304, %v710
        %v720 = vmul.f32 %v305, %v710
        %v721 = vmul.f32 %v306, %v710
        %v722 = vmul.f32 %v307, %v710
        %v723 = vmul.f32 %v308, %v710
        %v724 = vmul.f32 %v309, %v710
        %v725 = vmul.f32 %v310, %v710
        %v726 = vmul.f32 %v311, %v710
        %v727 = vmul.f32 %v312, %v710
        %v728 = vmul.f32 %v313, %v710
        %v729 = vmul.f32 %v314, %v710
        %v730 = vmul.f32 %v315, %v710
        %v731 = vmul.f32 %v316, %v710
        %v732 = vmul.f32 %v317, %v710
        %v733 = vmul.f32 %v318, %v710
        %v734 = vmul.f32 %v319, %v710
        %v735 = vmul.f32 %v320, %v710
        %v760 = vrot.slane %v712, 1
        %v761 = vrot.slane %v713, 1
        %v762 = vsel %vm503, %v760, %v761
        %v763 = vrot.slane %v714, 1
        %v764 = vsel %vm503, %v761, %v763
        %v765 = vrot.slane %v715, 1
        %v766 = vrot.slane %v716, 1
        %v767 = vsel %vm503, %v765, %v766
        %v768 = vrot.slane %v717, 1
        %v769 = vsel %vm503, %v766, %v768
        %v770 = vrot.slane %v718, 1
        %v771 = vrot.slane %v719, 1
        %v772 = vsel %vm503, %v770, %v771
        %v773 = vrot.slane %v720, 1
        %v774 = vsel %vm503, %v771, %v773
        %v775 = vrot.slane %v721, 1
        %v776 = vrot.slane %v722, 1
        %v777 = vsel %vm503, %v775, %v776
        %v778 = vrot.slane %v723, 1
        %v779 = vsel %vm503, %v776, %v778
        %v780 = vrot.slane %v724, 1
        %v781 = vrot.slane %v725, 1
        %v782 = vsel %vm503, %v780, %v781
        %v783 = vrot.slane %v726, 1
        %v784 = vsel %vm503, %v781, %v783
        %v785 = vrot.slane %v727, 1
        %v786 = vrot.slane %v728, 1
        %v787 = vsel %vm503, %v785, %v786
        %v788 = vrot.slane %v729, 1
        %v789 = vsel %vm503, %v786, %v788
        %v790 = vrot.slane %v730, 1
        %v791 = vrot.slane %v731, 1
        %v792 = vsel %vm503, %v790, %v791
        %v793 = vrot.slane %v732, 1
        %v794 = vsel %vm503, %v791, %v793
        %v795 = vrot.slane %v733, 1
        %v796 = vrot.slane %v734, 1
        %v797 = vsel %vm503, %v795, %v796
        %v798 = vrot.slane %v735, 1
        %v799 = vsel %vm503, %v796, %v798
        %v816 = vadd.f32 %v688, %v762
        %v817 = vadd.f32 %v689, %v764
        %v818 = vadd.f32 %v690, %v767
        %v819 = vadd.f32 %v691, %v769
        %v820 = vadd.f32 %v692, %v772
        %v821 = vadd.f32 %v693, %v774
        %v822 = vadd.f32 %v694, %v777
        %v823 = vadd.f32 %v695, %v779
        %v824 = vadd.f32 %v696, %v782
        %v825 = vadd.f32 %v697, %v784
        %v826 = vadd.f32 %v698, %v787
        %v827 = vadd.f32 %v699, %v789
        %v828 = vadd.f32 %v700, %v792
        %v829 = vadd.f32 %v701, %v794
        %v830 = vadd.f32 %v702, %v797
        %v831 = vadd.f32 %v703, %v799
        %s832 = scalar_lea.vmem [#allocation5], 2
        %v833 = vld [vmem:[%s832] sm:$0x1]
        %v835 = vlaneseq
        %v836 = vshrl.u32 %v835, 7
        %v837 = vsub.s32 0, %v836
        %v838 = vrot.slane %v833, %v837
        %v840 = vmul.f32 %v291, %v838
        %v841 = vmul.f32 %v292, %v838
        %v842 = vmul.f32 %v293, %v838
        %v843 = vmul.f32 %v294, %v838
        %v844 = vmul.f32 %v295, %v838
        %v845 = vmul.f32 %v296, %v838
        %v846 = vmul.f32 %v297, %v838
        %v847 = vmul.f32 %v298, %v838
        %v848 = vmul.f32 %v299, %v838
        %v849 = vmul.f32 %v300, %v838
        %v850 = vmul.f32 %v301, %v838
        %v851 = vmul.f32 %v302, %v838
        %v852 = vmul.f32 %v303, %v838
        %v853 = vmul.f32 %v304, %v838
        %v854 = vmul.f32 %v305, %v838
        %v855 = vmul.f32 %v306, %v838
        %v856 = vmul.f32 %v307, %v838
        %v857 = vmul.f32 %v308, %v838
        %v858 = vmul.f32 %v309, %v838
        %v859 = vmul.f32 %v310, %v838
        %v860 = vmul.f32 %v311, %v838
        %v861 = vmul.f32 %v312, %v838
        %v862 = vmul.f32 %v313, %v838
        %v863 = vmul.f32 %v314, %v838
        %vm888 = vcmask 1045504
        %v889 = vrot.slane %v840, 2
        %v890 = vrot.slane %v841, 2
        %v891 = vsel %vm888, %v889, %v890
        %v892 = vrot.slane %v842, 2
        %v893 = vsel %vm888, %v890, %v892
        %v894 = vrot.slane %v843, 2
        %v895 = vrot.slane %v844, 2
        %v896 = vsel %vm888, %v894, %v895
        %v897 = vrot.slane %v845, 2
        %v898 = vsel %vm888, %v895, %v897
        %v899 = vrot.slane %v846, 2
        %v900 = vrot.slane %v847, 2
        %v901 = vsel %vm888, %v899, %v900
        %v902 = vrot.slane %v848, 2
        %v903 = vsel %vm888, %v900, %v902
        %v904 = vrot.slane %v849, 2
        %v905 = vrot.slane %v850, 2
        %v906 = vsel %vm888, %v904, %v905
        %v907 = vrot.slane %v851, 2
        %v908 = vsel %vm888, %v905, %v907
        %v909 = vrot.slane %v852, 2
        %v910 = vrot.slane %v853, 2
        %v911 = vsel %vm888, %v909, %v910
        %v912 = vrot.slane %v854, 2
        %v913 = vsel %vm888, %v910, %v912
        %v914 = vrot.slane %v855, 2
        %v915 = vrot.slane %v856, 2
        %v916 = vsel %vm888, %v914, %v915
        %v917 = vrot.slane %v857, 2
        %v918 = vsel %vm888, %v915, %v917
        %v919 = vrot.slane %v858, 2
        %v920 = vrot.slane %v859, 2
        %v921 = vsel %vm888, %v919, %v920
        %v922 = vrot.slane %v860, 2
        %v923 = vsel %vm888, %v920, %v922
        %v924 = vrot.slane %v861, 2
        %v925 = vrot.slane %v862, 2
        %v926 = vsel %vm888, %v924, %v925
        %v927 = vrot.slane %v863, 2
        %v928 = vsel %vm888, %v925, %v927
        %v945 = vadd.f32 %v816, %v891
        %v946 = vadd.f32 %v817, %v893
        %v947 = vadd.f32 %v818, %v896
        %v948 = vadd.f32 %v819, %v898
        %v949 = vadd.f32 %v820, %v901
        %v950 = vadd.f32 %v821, %v903
        %v951 = vadd.f32 %v822, %v906
        %v952 = vadd.f32 %v823, %v908
        %v953 = vadd.f32 %v824, %v911
        %v954 = vadd.f32 %v825, %v913
        %v955 = vadd.f32 %v826, %v916
        %v956 = vadd.f32 %v827, %v918
        %v957 = vadd.f32 %v828, %v921
        %v958 = vadd.f32 %v829, %v923
        %v959 = vadd.f32 %v830, %v926
        %v960 = vadd.f32 %v831, %v928
        %s961 = scalar_lea.vmem [#allocation5], 5
        %v962 = vld [vmem:[%s961] sm:$0x1]
        %v964 = vlaneseq
        %v965 = vshrl.u32 %v964, 7
        %v966 = vsub.s32 0, %v965
        %v967 = vrot.slane %v962, %v966
        %v969 = vmul.f32 %v294, %v967
        %v970 = vmul.f32 %v295, %v967
        %v971 = vmul.f32 %v296, %v967
        %v972 = vmul.f32 %v297, %v967
        %v973 = vmul.f32 %v298, %v967
        %v974 = vmul.f32 %v299, %v967
        %v975 = vmul.f32 %v300, %v967
        %v976 = vmul.f32 %v301, %v967
        %v977 = vmul.f32 %v302, %v967
        %v978 = vmul.f32 %v303, %v967
        %v979 = vmul.f32 %v304, %v967
        %v980 = vmul.f32 %v305, %v967
        %v981 = vmul.f32 %v306, %v967
        %v982 = vmul.f32 %v307, %v967
        %v983 = vmul.f32 %v308, %v967
        %v984 = vmul.f32 %v309, %v967
        %v985 = vmul.f32 %v310, %v967
        %v986 = vmul.f32 %v311, %v967
        %v987 = vmul.f32 %v312, %v967
        %v988 = vmul.f32 %v313, %v967
        %v989 = vmul.f32 %v314, %v967
        %v990 = vmul.f32 %v315, %v967
        %v991 = vmul.f32 %v316, %v967
        %v992 = vmul.f32 %v317, %v967
        %v1017 = vrot.slane %v969, 2
        %v1018 = vrot.slane %v970, 2
        %v1019 = vsel %vm888, %v1017, %v1018
        %v1020 = vrot.slane %v971, 2
        %v1021 = vsel %vm888, %v1018, %v1020
        %v1022 = vrot.slane %v972, 2
        %v1023 = vrot.slane %v973, 2
        %v1024 = vsel %vm888, %v1022, %v1023
        %v1025 = vrot.slane %v974, 2
        %v1026 = vsel %vm888, %v1023, %v1025
        %v1027 = vrot.slane %v975, 2
        %v1028 = vrot.slane %v976, 2
        %v1029 = vsel %vm888, %v1027, %v1028
        %v1030 = vrot.slane %v977, 2
        %v1031 = vsel %vm888, %v1028, %v1030
        %v1032 = vrot.slane %v978, 2
        %v1033 = vrot.slane %v979, 2
        %v1034 = vsel %vm888, %v1032, %v1033
        %v1035 = vrot.slane %v980, 2
        %v1036 = vsel %vm888, %v1033, %v1035
        %v1037 = vrot.slane %v981, 2
        %v1038 = vrot.slane %v982, 2
        %v1039 = vsel %vm888, %v1037, %v1038
        %v1040 = vrot.slane %v983, 2
        %v1041 = vsel %vm888, %v1038, %v1040
        %v1042 = vrot.slane %v984, 2
        %v1043 = vrot.slane %v985, 2
        %v1044 = vsel %vm888, %v1042, %v1043
        %v1045 = vrot.slane %v986, 2
        %v1046 = vsel %vm888, %v1043, %v1045
        %v1047 = vrot.slane %v987, 2
        %v1048 = vrot.slane %v988, 2
        %v1049 = vsel %vm888, %v1047, %v1048
        %v1050 = vrot.slane %v989, 2
        %v1051 = vsel %vm888, %v1048, %v1050
        %v1052 = vrot.slane %v990, 2
        %v1053 = vrot.slane %v991, 2
        %v1054 = vsel %vm888, %v1052, %v1053
        %v1055 = vrot.slane %v992, 2
        %v1056 = vsel %vm888, %v1053, %v1055
        %v1073 = vadd.f32 %v945, %v1019
        %v1074 = vadd.f32 %v946, %v1021
        %v1075 = vadd.f32 %v947, %v1024
        %v1076 = vadd.f32 %v948, %v1026
        %v1077 = vadd.f32 %v949, %v1029
        %v1078 = vadd.f32 %v950, %v1031
        %v1079 = vadd.f32 %v951, %v1034
        %v1080 = vadd.f32 %v952, %v1036
        %v1081 = vadd.f32 %v953, %v1039
        %v1082 = vadd.f32 %v954, %v1041
        %v1083 = vadd.f32 %v955, %v1044
        %v1084 = vadd.f32 %v956, %v1046
        %v1085 = vadd.f32 %v957, %v1049
        %v1086 = vadd.f32 %v958, %v1051
        %v1087 = vadd.f32 %v959, %v1054
        %v1088 = vadd.f32 %v960, %v1056
        %s1089 = scalar_lea.vmem [#allocation5], 8
        %v1090 = vld [vmem:[%s1089] sm:$0x1]
        %v1092 = vlaneseq
        %v1093 = vshrl.u32 %v1092, 7
        %v1094 = vsub.s32 0, %v1093
        %v1095 = vrot.slane %v1090, %v1094
        %v1097 = vmul.f32 %v297, %v1095
        %v1098 = vmul.f32 %v298, %v1095
        %v1099 = vmul.f32 %v299, %v1095
        %v1100 = vmul.f32 %v300, %v1095
        %v1101 = vmul.f32 %v301, %v1095
        %v1102 = vmul.f32 %v302, %v1095
        %v1103 = vmul.f32 %v303, %v1095
        %v1104 = vmul.f32 %v304, %v1095
        %v1105 = vmul.f32 %v305, %v1095
        %v1106 = vmul.f32 %v306, %v1095
        %v1107 = vmul.f32 %v307, %v1095
        %v1108 = vmul.f32 %v308, %v1095
        %v1109 = vmul.f32 %v309, %v1095
        %v1110 = vmul.f32 %v310, %v1095
        %v1111 = vmul.f32 %v311, %v1095
        %v1112 = vmul.f32 %v312, %v1095
        %v1113 = vmul.f32 %v313, %v1095
        %v1114 = vmul.f32 %v314, %v1095
        %v1115 = vmul.f32 %v315, %v1095
        %v1116 = vmul.f32 %v316, %v1095
        %v1117 = vmul.f32 %v317, %v1095
        %v1118 = vmul.f32 %v318, %v1095
        %v1119 = vmul.f32 %v319, %v1095
        %v1120 = vmul.f32 %v320, %v1095
        %v1145 = vrot.slane %v1097, 2
        %v1146 = vrot.slane %v1098, 2
        %v1147 = vsel %vm888, %v1145, %v1146
        %v1148 = vrot.slane %v1099, 2
        %v1149 = vsel %vm888, %v1146, %v1148
        %v1150 = vrot.slane %v1100, 2
        %v1151 = vrot.slane %v1101, 2
        %v1152 = vsel %vm888, %v1150, %v1151
        %v1153 = vrot.slane %v1102, 2
        %v1154 = vsel %vm888, %v1151, %v1153
        %v1155 = vrot.slane %v1103, 2
        %v1156 = vrot.slane %v1104, 2
        %v1157 = vsel %vm888, %v1155, %v1156
        %v1158 = vrot.slane %v1105, 2
        %v1159 = vsel %vm888, %v1156, %v1158
        %v1160 = vrot.slane %v1106, 2
        %v1161 = vrot.slane %v1107, 2
        %v1162 = vsel %vm888, %v1160, %v1161
        %v1163 = vrot.slane %v1108, 2
        %v1164 = vsel %vm888, %v1161, %v1163
        %v1165 = vrot.slane %v1109, 2
        %v1166 = vrot.slane %v1110, 2
        %v1167 = vsel %vm888, %v1165, %v1166
        %v1168 = vrot.slane %v1111, 2
        %v1169 = vsel %vm888, %v1166, %v1168
        %v1170 = vrot.slane %v1112, 2
        %v1171 = vrot.slane %v1113, 2
        %v1172 = vsel %vm888, %v1170, %v1171
        %v1173 = vrot.slane %v1114, 2
        %v1174 = vsel %vm888, %v1171, %v1173
        %v1175 = vrot.slane %v1115, 2
        %v1176 = vrot.slane %v1116, 2
        %v1177 = vsel %vm888, %v1175, %v1176
        %v1178 = vrot.slane %v1117, 2
        %v1179 = vsel %vm888, %v1176, %v1178
        %v1180 = vrot.slane %v1118, 2
        %v1181 = vrot.slane %v1119, 2
        %v1182 = vsel %vm888, %v1180, %v1181
        %v1183 = vrot.slane %v1120, 2
        %v1184 = vsel %vm888, %v1181, %v1183
        %v1201 = vadd.f32 %v1073, %v1147
        %v1202 = vadd.f32 %v1074, %v1149
        %v1203 = vadd.f32 %v1075, %v1152
        %v1204 = vadd.f32 %v1076, %v1154
        %v1205 = vadd.f32 %v1077, %v1157
        %v1206 = vadd.f32 %v1078, %v1159
        %v1207 = vadd.f32 %v1079, %v1162
        %v1208 = vadd.f32 %v1080, %v1164
        %v1209 = vadd.f32 %v1081, %v1167
        %v1210 = vadd.f32 %v1082, %v1169
        %v1211 = vadd.f32 %v1083, %v1172
        %v1212 = vadd.f32 %v1084, %v1174
        %v1213 = vadd.f32 %v1085, %v1177
        %v1214 = vadd.f32 %v1086, %v1179
        %v1215 = vadd.f32 %v1087, %v1182
        %v1216 = vadd.f32 %v1088, %v1184
        %v1217 = vmax.f32 %v1201, 0.0
        %v1218 = vmax.f32 %v1202, 0.0
        %v1219 = vmax.f32 %v1203, 0.0
        %v1220 = vmax.f32 %v1204, 0.0
        %v1221 = vmax.f32 %v1205, 0.0
        %v1222 = vmax.f32 %v1206, 0.0
        %v1223 = vmax.f32 %v1207, 0.0
        %v1224 = vmax.f32 %v1208, 0.0
        %v1225 = vmax.f32 %v1209, 0.0
        %v1226 = vmax.f32 %v1210, 0.0
        %v1227 = vmax.f32 %v1211, 0.0
        %v1228 = vmax.f32 %v1212, 0.0
        %v1229 = vmax.f32 %v1213, 0.0
        %v1230 = vmax.f32 %v1214, 0.0
        %v1231 = vmax.f32 %v1215, 0.0
        %v1232 = vmax.f32 %v1216, 0.0
        %v1233 = vpack.c.bf16 %v1218, %v1217
        %v1234 = vpack.c.bf16 %v1220, %v1219
        %v1235 = vpack.c.bf16 %v1222, %v1221
        %v1236 = vpack.c.bf16 %v1224, %v1223
        %v1237 = vpack.c.bf16 %v1226, %v1225
        %v1238 = vpack.c.bf16 %v1228, %v1227
        %v1239 = vpack.c.bf16 %v1230, %v1229
        %v1240 = vpack.c.bf16 %v1232, %v1231
        %v1241 = vld [vmem:[#allocation7] sm:$0xf]
        %v1242 = vld [vmem:[#allocation7 + $0x4] sm:$0xf]
        %v1243 = vld [vmem:[#allocation7 + $0x8] sm:$0xf]
        %v1244 = vld [vmem:[#allocation7 + $0xc] sm:$0xf]
        %v1245 = vld [vmem:[#allocation7 + $0x10] sm:$0xf]
        %v1246 = vld [vmem:[#allocation7 + $0x14] sm:$0xf]
        %v1247 = vld [vmem:[#allocation7 + $0x18] sm:$0xf]
        %v1248 = vld [vmem:[#allocation7 + $0x1c] sm:$0xf]
        %v1249 = vld [vmem:[#allocation7 + $0x20] sm:$0xf]
        %v1250 = vld [vmem:[#allocation7 + $0x24] sm:$0xf]
        %v1251 = vld [vmem:[#allocation7 + $0x28] sm:$0xf]
        %v1252 = vld [vmem:[#allocation7 + $0x2c] sm:$0xf]
        %v1253 = vld [vmem:[#allocation7 + $0x30] sm:$0xf]
        %v1254 = vld [vmem:[#allocation7 + $0x34] sm:$0xf]
        %v1255 = vld [vmem:[#allocation7 + $0x38] sm:$0xf]
        %v1256 = vld [vmem:[#allocation7 + $0x3c] sm:$0xf]
        %v1257 = vld [vmem:[%s4] sm:$0x1]
        %v1259 = vlaneseq
        %v1260 = vshrl.u32 %v1259, 7
        %v1261 = vsub.s32 0, %v1260
        %v1262 = vrot.slane %v1257, %v1261
        %v1280 = vunpack.c.l.b16 %v1241
        %v1281 = vunpack.c.l.b16 %v1242
        %v1282 = vunpack.c.l.b16 %v1243
        %v1283 = vunpack.c.l.b16 %v1244
        %v1284 = vunpack.c.l.b16 %v1245
        %v1285 = vunpack.c.l.b16 %v1246
        %v1286 = vunpack.c.l.b16 %v1247
        %v1287 = vunpack.c.l.b16 %v1248
        %v1288 = vunpack.c.l.b16 %v1249
        %v1289 = vunpack.c.l.b16 %v1250
        %v1290 = vunpack.c.l.b16 %v1251
        %v1291 = vunpack.c.l.b16 %v1252
        %v1292 = vunpack.c.l.b16 %v1253
        %v1293 = vunpack.c.l.b16 %v1254
        %v1294 = vunpack.c.l.b16 %v1255
        %v1295 = vunpack.c.l.b16 %v1256
        %v1296 = vpack.c.b16 %v1281, %v1280
        %v1297 = vpack.c.b16 %v1283, %v1282
        %v1298 = vpack.c.b16 %v1285, %v1284
        %v1299 = vpack.c.b16 %v1287, %v1286
        %v1300 = vpack.c.b16 %v1289, %v1288
        %v1301 = vpack.c.b16 %v1291, %v1290
        %v1302 = vpack.c.b16 %v1293, %v1292
        %v1303 = vpack.c.b16 %v1295, %v1294
        %1312 = vmatprep.subr.bf16.mxu0 0
        %1313 = vmatpush1.bf16.msra.mxu0 %v1296
        %1314 = vmatprep.subr.bf16.mxu0 0
        %1315 = vmatpush1.bf16.msra.mxu0 %v1297
        %1316 = vmatprep.subr.bf16.mxu0 0
        %1317 = vmatpush1.bf16.msra.mxu0 %v1298
        %1318 = vmatprep.subr.bf16.mxu0 0
        %1319 = vmatpush1.bf16.msra.mxu0 %v1299
        %1320 = vmatprep.subr.bf16.mxu0 0
        %1321 = vmatpush1.bf16.msra.mxu0 %v1300
        %1322 = vmatprep.subr.bf16.mxu0 0
        %1323 = vmatpush1.bf16.msra.mxu0 %v1301
        %1324 = vmatprep.subr.bf16.mxu0 0
        %1325 = vmatpush1.bf16.msra.mxu0 %v1302
        %1326 = vmatprep.subr.bf16.mxu0 0
        %1327 = vmatpush1.bf16.msra.mxu0 %v1303
        %1328 = vmatprep.subr.bf16.mxu0 0
        %1329 = vmatpush1.bf16.msra.mxu0 0
        %1330 = vmatprep.subr.bf16.mxu0 0
        %1331 = vmatpush1.bf16.msra.mxu0 0
        %1332 = vmatprep.subr.bf16.mxu0 0
        %1333 = vmatpush1.bf16.msra.mxu0 0
        %1334 = vmatprep.subr.bf16.mxu0 0
        %1335 = vmatpush1.bf16.msra.mxu0 0
        %1336 = vmatprep.subr.bf16.mxu0 0
        %1337 = vmatpush1.bf16.msra.mxu0 0
        %1338 = vmatprep.subr.bf16.mxu0 0
        %1339 = vmatpush1.bf16.msra.mxu0 0
        %1340 = vmatprep.subr.bf16.mxu0 0
        %1341 = vmatpush1.bf16.msra.mxu0 0
        %1342 = vmatprep.subr.bf16.mxu0 0
        %1343 = vmatpush1.bf16.msra.mxu0 0
        %1344 = vmatprep.mubr.bf16.mxu0 0
        %1345 = vmatmul.mubr.bf16.gmra.mrb[0].mxu0 %v1233
        %v1346 = vpop.f32.mrb[0].mxu0
        %v1347 = vadd.f32 %v1262, %v1346
        %v1348 = vpop.f32.mrb[0].mxu0
        %v1349 = vpop.f32.mrb[0].mxu0
        %v1350 = vadd.f32 %v1262, %v1349
        %v1351 = vpop.f32.mrb[0].mxu0
        %1352 = vmatprep.mubr.bf16.mxu0 0
        %1353 = vmatmul.mubr.bf16.gmra.mrb[0].mxu0 %v1234
        %v1354 = vpop.f32.mrb[0].mxu0
        %v1355 = vadd.f32 %v1262, %v1354
        %v1356 = vpop.f32.mrb[0].mxu0
        %v1357 = vpop.f32.mrb[0].mxu0
        %v1358 = vadd.f32 %v1262, %v1357
        %v1359 = vpop.f32.mrb[0].mxu0
        %1360 = vmatprep.mubr.bf16.mxu0 0
        %1361 = vmatmul.mubr.bf16.gmra.mrb[0].mxu0 %v1235
        %v1362 = vpop.f32.mrb[0].mxu0
        %v1363 = vadd.f32 %v1262, %v1362
        %v1364 = vpop.f32.mrb[0].mxu0
        %v1365 = vpop.f32.mrb[0].mxu0
        %v1366 = vadd.f32 %v1262, %v1365
        %v1367 = vpop.f32.mrb[0].mxu0
        %1368 = vmatprep.mubr.bf16.mxu0 0
        %1369 = vmatmul.mubr.bf16.gmra.mrb[0].mxu0 %v1236
        %v1370 = vpop.f32.mrb[0].mxu0
        %v1371 = vadd.f32 %v1262, %v1370
        %v1372 = vpop.f32.mrb[0].mxu0
        %v1373 = vpop.f32.mrb[0].mxu0
        %v1374 = vadd.f32 %v1262, %v1373
        %v1375 = vpop.f32.mrb[0].mxu0
        %1376 = vmatprep.mubr.bf16.mxu0 0
        %1377 = vmatmul.mubr.bf16.gmra.mrb[0].mxu0 %v1237
        %v1378 = vpop.f32.mrb[0].mxu0
        %v1379 = vadd.f32 %v1262, %v1378
        %v1380 = vpop.f32.mrb[0].mxu0
        %v1381 = vpop.f32.mrb[0].mxu0
        %v1382 = vadd.f32 %v1262, %v1381
        %v1383 = vpop.f32.mrb[0].mxu0
        %1384 = vmatprep.mubr.bf16.mxu0 0
        %1385 = vmatmul.mubr.bf16.gmra.mrb[0].mxu0 %v1238
        %v1386 = vpop.f32.mrb[0].mxu0
        %v1387 = vadd.f32 %v1262, %v1386
        %v1388 = vpop.f32.mrb[0].mxu0
        %v1389 = vpop.f32.mrb[0].mxu0
        %v1390 = vadd.f32 %v1262, %v1389
        %v1391 = vpop.f32.mrb[0].mxu0
        %1392 = vmatprep.mubr.bf16.mxu0 0
        %1393 = vmatmul.mubr.bf16.gmra.mrb[0].mxu0 %v1239
        %v1394 = vpop.f32.mrb[0].mxu0
        %v1395 = vadd.f32 %v1262, %v1394
        %v1396 = vpop.f32.mrb[0].mxu0
        %v1397 = vpop.f32.mrb[0].mxu0
        %v1398 = vadd.f32 %v1262, %v1397
        %v1399 = vpop.f32.mrb[0].mxu0
        %1400 = vmatprep.mubr.bf16.mxu0 0
        %1401 = vmatmul.mubr.bf16.gmra.mrb[0].mxu0 %v1240
        %v1402 = vpop.f32.mrb[0].mxu0
        %v1403 = vadd.f32 %v1262, %v1402
        %v1404 = vpop.f32.mrb[0].mxu0
        %v1405 = vpop.f32.mrb[0].mxu0
        %v1406 = vadd.f32 %v1262, %v1405
        %v1407 = vpop.f32.mrb[0].mxu0
        %1408 = vdwg.mxu0
        %v1433 = vrot.slane %v294, 1
        %v1434 = vrot.slane %v295, 1
        %v1435 = vsel %vm503, %v1433, %v1434
        %v1436 = vrot.slane %v296, 1
        %v1437 = vsel %vm503, %v1434, %v1436
        %v1438 = vrot.slane %v297, 1
        %v1439 = vrot.slane %v298, 1
        %v1440 = vsel %vm503, %v1438, %v1439
        %v1441 = vrot.slane %v299, 1
        %v1442 = vsel %vm503, %v1439, %v1441
        %v1443 = vrot.slane %v300, 1
        %v1444 = vrot.slane %v301, 1
        %v1445 = vsel %vm503, %v1443, %v1444
        %v1446 = vrot.slane %v302, 1
        %v1447 = vsel %vm503, %v1444, %v1446
        %v1448 = vrot.slane %v303, 1
        %v1449 = vrot.slane %v304, 1
        %v1450 = vsel %vm503, %v1448, %v1449
        %v1451 = vrot.slane %v305, 1
        %v1452 = vsel %vm503, %v1449, %v1451
        %v1453 = vrot.slane %v306, 1
        %v1454 = vrot.slane %v307, 1
        %v1455 = vsel %vm503, %v1453, %v1454
        %v1456 = vrot.slane %v308, 1
        %v1457 = vsel %vm503, %v1454, %v1456
        %v1458 = vrot.slane %v309, 1
        %v1459 = vrot.slane %v310, 1
        %v1460 = vsel %vm503, %v1458, %v1459
        %v1461 = vrot.slane %v311, 1
        %v1462 = vsel %vm503, %v1459, %v1461
        %v1463 = vrot.slane %v312, 1
        %v1464 = vrot.slane %v313, 1
        %v1465 = vsel %vm503, %v1463, %v1464
        %v1466 = vrot.slane %v314, 1
        %v1467 = vsel %vm503, %v1464, %v1466
        %v1468 = vrot.slane %v315, 1
        %v1469 = vrot.slane %v316, 1
        %v1470 = vsel %vm503, %v1468, %v1469
        %v1471 = vrot.slane %v317, 1
        %v1472 = vsel %vm503, %v1469, %v1471
        %v1489 = vadd.f32 %v1347, %v1435
        %v1490 = vadd.f32 %v1350, %v1437
        %v1491 = vadd.f32 %v1355, %v1440
        %v1492 = vadd.f32 %v1358, %v1442
        %v1493 = vadd.f32 %v1363, %v1445
        %v1494 = vadd.f32 %v1366, %v1447
        %v1495 = vadd.f32 %v1371, %v1450
        %v1496 = vadd.f32 %v1374, %v1452
        %v1497 = vadd.f32 %v1379, %v1455
        %v1498 = vadd.f32 %v1382, %v1457
        %v1499 = vadd.f32 %v1387, %v1460
        %v1500 = vadd.f32 %v1390, %v1462
        %v1501 = vadd.f32 %v1395, %v1465
        %v1502 = vadd.f32 %v1398, %v1467
        %v1503 = vadd.f32 %v1403, %v1470
        %v1504 = vadd.f32 %v1406, %v1472
        %1505 = vst [vmem:[%s285] sm:$0xff] %v1489
        %1506 = vst [vmem:[%s285 + $0x8] sm:$0xff] %v1490
        %1507 = vst [vmem:[%s285 + $0x10] sm:$0xff] %v1491
        %1508 = vst [vmem:[%s285 + $0x18] sm:$0xff] %v1492
        %1509 = vst [vmem:[%s285 + $0x20] sm:$0xff] %v1493
        %1510 = vst [vmem:[%s285 + $0x28] sm:$0xff] %v1494
        %1511 = vst [vmem:[%s285 + $0x30] sm:$0xff] %v1495
        %1512 = vst [vmem:[%s285 + $0x38] sm:$0xff] %v1496
        %1513 = vst [vmem:[%s285 + $0x40] sm:$0xff] %v1497
        %1514 = vst [vmem:[%s285 + $0x48] sm:$0xff] %v1498
        %1515 = vst [vmem:[%s285 + $0x50] sm:$0xff] %v1499
        %1516 = vst [vmem:[%s285 + $0x58] sm:$0xff] %v1500
        %1517 = vst [vmem:[%s285 + $0x60] sm:$0xff] %v1501
        %1518 = vst [vmem:[%s285 + $0x68] sm:$0xff] %v1502
        %1519 = vst [vmem:[%s285 + $0x70] sm:$0xff] %v1503
        %1520 = vst [vmem:[%s285 + $0x78] sm:$0xff] %v1504
        %s1521 = sand.u32 %s155, 1
        %s1522 = scalar_lea.sflag [#allocation4], %s1521
        %s1523 = sand.u32 %s155, 1
        %s1524 = smul.addr %s1523, 128
        %s1525 = scalar_lea.vmem [#allocation8], %s1524
        // Predicated region
        $region53: #{tpu_custom_call.1} parent=39 // pred_check
          %p1526 = pneg %p165
        $region54: #{tpu_custom_call.1} parent=39 // pred_check_branch
          %1528 = sbr.rel (%p1526) target = $region56
        $region55: #{tpu_custom_call.1} parent=39 // pred_region
          %s1529 = smul.u32 8, %s28
          %s1531 = ssub.s32 2048, 2048
          %1532 = vsyncadd %s1522, %s1531
          %s1533 = smul.addr %s1529, 2
          %s1534 = smul.addr %s27, 32
          %s1535 = sadd.s32 %s1533, %s1534
          %s1536 = smul.addr %s1535, 128
          %s1537 = scalar_lea.hbm %s5, %s1536
          %s1538 = sshll.u32 %s1525, 4
          %s1539 = int_to_ptr.vmem [resolvable:$true] %s1538
          %1544 = dma.vmem_to_hbm [thread:$0]  %s1539, 2048, %s1537, %s1522, 128, 128, 8
        $region56: #{tpu_custom_call.1} parent=39 // pred_fallthru
          _
      $region40: #{tpu_custom_call.1} parent=5 // pred_fallthru
        _
      %p1545 = scmp.le.s32.totalorder 2, %s18
      // Predicated region
      $region57: #{tpu_custom_call.1} parent=5 // pred_check
        %p1546 = pneg %p1545
      $region58: #{tpu_custom_call.1} parent=5 // pred_check_branch
        %1548 = sbr.rel (%p1546) target = $region60
      $region59: #{tpu_custom_call.1} parent=5 // pred_region
        %s1549 = ssub.s32 %s18, 2
        // Predicated region
        $region61: #{tpu_custom_call.1} parent=59 // pred_check
          %p1550 = pneg %p171
        $region62: #{tpu_custom_call.1} parent=59 // pred_check_branch
          %1552 = sbr.rel (%p1550) target = $region64
        $region63: #{tpu_custom_call.1} parent=59 // pred_region
          %s1553 = sand.u32 %s156, 1
          %s1554 = scalar_lea.sflag [#allocation4], %s1553
          %s1555 = sand.u32 %s156, 1
          %s1556 = smul.addr %s1555, 128
          %s1557 = scalar_lea.vmem [#allocation8], %s1556
          %1558 = dma.done %s1554, 2048
        $region64: #{tpu_custom_call.1} parent=59 // pred_fallthru
          _
      $region60: #{tpu_custom_call.1} parent=5 // pred_fallthru
        _
    $region6: #{tpu_custom_call.1} parent=1 // loop_footer
      %s22 = sadd.s32 1, %s18
    $region7: #{tpu_custom_call.1} parent=1 // loop_footer_branch
      %17 = sbr.rel target = $region3
    $region8: #{tpu_custom_call.1} parent=1 // loop_exit
      _
    %1559 = vsyncpa [#allocation3], 1
    %s1560 = scalar_lea.sflag [#allocation3], 1
    %1561 = vsyncpa %s1560, 1
    %1562 = vsyncpa [#allocation6], 1
    %1563 = vsyncpa [#allocation4], 1
    %s1564 = scalar_lea.sflag [#allocation4], 1
    %1565 = vsyncpa %s1564, 1

</llo_original>
